<compile_context>
chip_gen: v7x
topology: tpu7x:2x2x1
jax: 0.10.0
libtpu: 0.0.40
codegen_flags: <defaults>
</compile_context>

<pallas_src>
from itertools import chain, count

import numpy as np
import jax
import jax.numpy as jnp
from jax.experimental import pallas as pl
from jax.experimental.pallas import tpu as pltpu

# ----------------------- configuration (small, consistent with __init__) -------
N_FEATS = 14
N_CLASS = 2
COND_LEN = 2
NOISE_DIM = 8
N_CHANNELS = 4
PAC = 1
MAX_CONV_LEN = 4
BATCH = 4
EPS = 1e-5
NEG_SLOPE = 0.01  # nn.LeakyReLU default

TRANSFORMS_INFO = {
    "num1":       {"rle": (0, 1)},
    "num1_modes": {"rle": (1, 4), "map": {0: "m0", 1: "m1", 2: "m2", 3: "m3"}},
    "num2":       {"rle": (5, 1)},
    "num2_modes": {"rle": (6, 4), "map": {0: "m0", 1: "m1", 2: "m2", 3: "m3"}},
    "cat1":       {"rle": (10, 2), "map": {0: "a", 1: "b"}},
    "label":      {"rle": (12, 2), "map": {0: "c0", 1: "c1"}},
}


def _find_side(target):
    sides = chain((2 ** i for i in range(2, MAX_CONV_LEN - 1)),
                  map(lambda x: 2 ** (MAX_CONV_LEN - 1) * x, count(1)))
    for side in sides:
        if side * side >= target:
            return side


def _make_dims(c0, side):
    dims = [(c0, side), (N_CHANNELS, side // 2)]
    while len(dims) < MAX_CONV_LEN and dims[-1][1] != 1:
        dims.append((dims[-1][0] * 2, dims[-1][1] // 2))
    return dims


D_SIDE = _find_side(N_FEATS + COND_LEN)          # 4
G_SIDE = _find_side(N_FEATS)                     # 4
C_SIDE = _find_side(N_FEATS - N_CLASS)           # 4
D_DIMS = _make_dims(PAC, D_SIDE)                 # [(1,4),(4,2),(8,1)]
G_DIMS = _make_dims(1, G_SIDE)                   # [(1,4),(4,2),(8,1)]
C_DIMS = _make_dims(1, C_SIDE)                   # [(1,4),(4,2),(8,1)]

# padded kernel slab geometry: rows = sublane multiple, cols = one full lane group
LANE = 128
ROWS = 8

# per-block output spatial sizes (static), used for BatchNorm sample counts
D_OHWS = tuple((D_SIDE // (2 ** (i + 1))) ** 2 for i in range(len(D_DIMS) - 1))   # (4, 1)
C_OHWS = tuple((C_SIDE // (2 ** (i + 1))) ** 2 for i in range(len(C_DIMS) - 1))   # (4, 1)
G_BN_OHWS = tuple((G_SIDE // (2 ** (len(G_DIMS) - 1 - li))) ** 2
                  for li in range(len(G_DIMS) - 1))                               # (1, 4)

VMEM_SPEC = pl.BlockSpec(memory_space=pltpu.MemorySpace.VMEM)

# --------------------------------- Pallas kernels -------------------------------


def _bn_lrelu(y, rowmask, gamma, beta, S, ST, n_samples):
    """BatchNorm2d (training-mode batch stats) + LeakyReLU on a [ROWS, LANE] slab whose
    columns are laid out channel-major (c, h, w).  Per-channel statistics are gathered
    with the one-hot selector S [col -> channel]; padded rows are excluded via rowmask."""
    inv_n = 1.0 / float(n_samples)
    ym = y * rowmask
    ch_sum = jnp.sum(jnp.dot(ym, S, preferred_element_type=jnp.float32),
                     axis=0, keepdims=True)
    ch_sq = jnp.sum(jnp.dot(ym * y, S, preferred_element_type=jnp.float32),
                    axis=0, keepdims=True)
    mean = ch_sum * inv_n
    var = ch_sq * inv_n - mean * mean                  # biased variance, as in training BN
    a = gamma * jax.lax.rsqrt(var + EPS)
    c = beta - mean * a
    a_cols = jnp.dot(a, ST, preferred_element_type=jnp.float32)
    c_cols = jnp.dot(c, ST, preferred_element_type=jnp.float32)
    yn = y * a_cols + c_cols
    return jnp.where(yn > 0, yn, NEG_SLOPE * yn)


def make_convnet_kernel(n_blocks, counts, b_real):
    """Fused discriminator / classifier forward.
    refs = [x, (W, b, gamma, beta, S, ST) * n_blocks, Wf, bf, out_logits, out_feat]."""
    def kernel(*refs):
        x_ref = refs[0]
        out_logits_ref, out_feat_ref = refs[-2], refs[-1]
        rowmask = (jax.lax.broadcasted_iota(jnp.int32, (ROWS, LANE), 0)
                   < b_real).astype(jnp.float32)
        h = x_ref[...]
        idx = 1
        for blk in range(n_blocks):
            W = refs[idx][...]
            b = refs[idx + 1][...]
            gamma = refs[idx + 2][...]
            beta = refs[idx + 3][...]
            S = refs[idx + 4][...]
            ST = refs[idx + 5][...]
            idx += 6
            y = jnp.dot(h, W, preferred_element_type=jnp.float32) + b
            h = _bn_lrelu(y, rowmask, gamma, beta, S, ST, counts[blk])
        Wf = refs[idx][...]
        bf = refs[idx + 1][...]
        out_feat_ref[...] = h                                     # penultimate features
        yf = jnp.dot(h, Wf, preferred_element_type=jnp.float32) + bf
        out_logits_ref[...] = pl.reciprocal(1.0 + jnp.exp(-yf), approx=True)  # sigmoid
    return kernel


def make_generator_kernel(counts, b_real):
    """Fused generator forward + CTABGAN.Activations.
    refs = [z, gumbel, (M, b [, gamma, beta, S, ST]) per layer,
            tanh_mask, gum_mask, Seg, SegT, out_logits, out_fake]."""
    n_layers = len(counts) + 1

    def kernel(*refs):
        z_ref, gum_ref = refs[0], refs[1]
        out_logits_ref, out_fake_ref = refs[-2], refs[-1]
        tanh_m = refs[-6][...]
        gum_m = refs[-5][...]
        Seg = refs[-4][...]
        SegT = refs[-3][...]
        rowmask = (jax.lax.broadcasted_iota(jnp.int32, (ROWS, LANE), 0)
                   < b_real).astype(jnp.float32)
        h = z_ref[...]
        idx = 2
        for li in range(n_layers):
            M = refs[idx][...]
            b = refs[idx + 1][...]
            idx += 2
            y = jnp.dot(h, M, preferred_element_type=jnp.float32) + b
            if li < n_layers - 1:
                gamma = refs[idx][...]
                beta = refs[idx + 1][...]
                S = refs[idx + 2][...]
                ST = refs[idx + 3][...]
                idx += 4
                h = _bn_lrelu(y, rowmask, gamma, beta, S, ST, counts[li])
            else:
                h = y
        out_logits_ref[...] = h

        # CTABGAN.Activations: tanh on scalar columns, gumbel-softmax (tau=1, soft) on
        # one-hot segments.  Constant masks; single exp pass; segment sums via one-hot matmul.
        t = jnp.tanh(h) * tanh_m
        zz = (h + gum_ref[...]) * gum_m
        stab = jnp.max(zz, axis=1, keepdims=True)          # per-row stabilizer (>= 0)
        e = jnp.exp(zz - stab) * gum_m
        denom = jnp.dot(jnp.dot(e, Seg, preferred_element_type=jnp.float32), SegT,
                        preferred_element_type=jnp.float32) + (1.0 - gum_m)
        out_fake_ref[...] = t + e / denom
    return kernel


# --------------------- host-side weight folding (conv -> dense GEMM) ------------


def conv_dense(W, IH, IW, stride, pad):
    """Conv2d weight [Cout, Cin, KH, KW] -> M[Cin*IH*IW, Cout*OH*OW] on NCHW-flat vectors."""
    Wn = np.asarray(W, dtype=np.float32)
    Cout, Cin, KH, KW = Wn.shape
    OH = (IH + 2 * pad - KH) // stride + 1
    OW = (IW + 2 * pad - KW) // stride + 1
    M = np.zeros((Cin * IH * IW, Cout * OH * OW), np.float32)
    for cout in range(Cout):
        for oh in range(OH):
            for ow in range(OW):
                col = (cout * OH + oh) * OW + ow
                for cin in range(Cin):
                    for kh in range(KH):
                        ih = oh * stride - pad + kh
                        if not 0 <= ih < IH:
                            continue
                        for kw in range(KW):
                            iw = ow * stride - pad + kw
                            if not 0 <= iw < IW:
                                continue
                            M[(cin * IH + ih) * IW + iw, col] = Wn[cout, cin, kh, kw]
    return M, OH, OW


def convT_dense(W, IH, IW, stride, pad):
    """ConvTranspose2d weight [Cin, Cout, KH, KW] -> M[Cin*IH*IW, Cout*OH*OW]."""
    Wn = np.asarray(W, dtype=np.float32)
    Cin, Cout, KH, KW = Wn.shape
    OH = (IH - 1) * stride - 2 * pad + KH
    OW = (IW - 1) * stride - 2 * pad + KW
    M = np.zeros((Cin * IH * IW, Cout * OH * OW), np.float32)
    for cin in range(Cin):
        for ih in range(IH):
            for iw in range(IW):
                row = (cin * IH + ih) * IW + iw
                for cout in range(Cout):
                    for kh in range(KH):
                        oh = ih * stride - pad + kh
                        if not 0 <= oh < OH:
                            continue
                        for kw in range(KW):
                            ow = iw * stride - pad + kw
                            if not 0 <= ow < OW:
                                continue
                            M[row, (cout * OH + oh) * OW + ow] += Wn[cin, cout, kh, kw]
    return M, OH, OW


def pad_mat(M):
    out = np.zeros((LANE, LANE), np.float32)
    out[:M.shape[0], :M.shape[1]] = M
    return jnp.asarray(out)


def pad_row(v):
    v = np.asarray(v, np.float32).reshape(-1)
    out = np.zeros((1, LANE), np.float32)
    out[0, :v.shape[0]] = v
    return jnp.asarray(out)


def bias_cols(b, ohw):
    # column layout is channel-major (c, h, w): repeat each channel bias ohw times
    return pad_row(np.repeat(np.asarray(b, np.float32), ohw))


def channel_selector(cout, ohw):
    S = np.zeros((LANE, LANE), np.float32)
    for c in range(cout):
        S[c * ohw:(c + 1) * ohw, c] = 1.0
    return jnp.asarray(S), jnp.asarray(np.ascontiguousarray(S.T))


def activation_masks():
    tanh_m = np.zeros((1, LANE), np.float32)
    gum_m = np.zeros((1, LANE), np.float32)
    Seg = np.zeros((LANE, LANE), np.float32)
    seg_id = 0
    for info in TRANSFORMS_INFO.values():
        i, length = info["rle"]
        if "map" not in info:
            tanh_m[0, i] = 1.0
        else:
            gum_m[0, i:i + length] = 1.0
            Seg[i:i + length, seg_id] = 1.0
            seg_id += 1
    return (jnp.asarray(tanh_m), jnp.asarray(gum_m),
            jnp.asarray(Seg), jnp.asarray(np.ascontiguousarray(Seg.T)))


# --------------------------- deterministic parameter init -----------------------


def init_conv_net_params(key, dims, in_channels):
    side = dims[0][1]
    IH = IW = side
    cin = in_channels
    blocks = []
    for i in range(len(dims) - 1):
        cout = dims[i + 1][0]
        key, k1, k2 = jax.random.split(key, 3)
        bound = 1.0 / np.sqrt(cin * 16)
        W = np.asarray(jax.random.uniform(k1, (cout, cin, 4, 4), jnp.float32, -bound, bound))
        b = np.asarray(jax.random.uniform(k2, (cout,), jnp.float32, -bound, bound))
        M, OH, OW = conv_dense(W, IH, IW, 2, 1)
        S, ST = channel_selector(cout, OH * OW)
        blocks.append(dict(W=pad_mat(M), b=bias_cols(b, OH * OW),
                           gamma=pad_row(np.ones(cout, np.float32)),
                           beta=pad_row(np.zeros(cout, np.float32)),
                           S=S, ST=ST))
        IH, IW, cin = OH, OW, cout
    kf = dims[-1][1]
    key, k1, k2 = jax.random.split(key, 3)
    bound = 1.0 / np.sqrt(cin * kf * kf)
    Wf = np.asarray(jax.random.uniform(k1, (1, cin, kf, kf), jnp.float32, -bound, bound))
    bf = np.asarray(jax.random.uniform(k2, (1,), jnp.float32, -bound, bound))
    Mf, _, _ = conv_dense(Wf, IH, IW, 1, 0)
    return dict(blocks=blocks, Wf=pad_mat(Mf), bf=pad_row(bf))


def init_generator_params(key, g_dims, in_dim):
    layers = []
    c0, k0 = g_dims[-1]
    key, k1, k2 = jax.random.split(key, 3)
    bound = 1.0 / np.sqrt(in_dim * k0 * k0)
    W = np.asarray(jax.random.uniform(k1, (in_dim, c0, k0, k0), jnp.float32, -bound, bound))
    b = np.asarray(jax.random.uniform(k2, (c0,), jnp.float32, -bound, bound))
    M, OH, OW = convT_dense(W, 1, 1, 1, 0)
    S, ST = channel_selector(c0, OH * OW)
    layers.append(dict(M=pad_mat(M), b=bias_cols(b, OH * OW),
                       gamma=pad_row(np.ones(c0, np.float32)),
                       beta=pad_row(np.zeros(c0, np.float32)), S=S, ST=ST))
    IH, IW = OH, OW
    n = len(g_dims)
    for i in range(n - 1):
        cin = g_dims[-(i + 1)][0]
        cout = g_dims[-(i + 2)][0]
        key, k1, k2 = jax.random.split(key, 3)
        bound = 1.0 / np.sqrt(cin * 16)
        W = np.asarray(jax.random.uniform(k1, (cin, cout, 4, 4), jnp.float32, -bound, bound))
        b = np.asarray(jax.random.uniform(k2, (cout,), jnp.float32, -bound, bound))
        M, OH, OW = convT_dense(W, IH, IW, 2, 1)
        layer = dict(M=pad_mat(M), b=bias_cols(b, OH * OW))
        if i != n - 2:  # last ConvTranspose has no BN / LeakyReLU after it
            S, ST = channel_selector(cout, OH * OW)
            layer.update(gamma=pad_row(np.ones(cout, np.float32)),
                         beta=pad_row(np.zeros(cout, np.float32)), S=S, ST=ST)
        layers.append(layer)
        IH, IW = OH, OW
    tanh_m, gum_m, Seg, SegT = activation_masks()
    return dict(layers=layers, tanh_m=tanh_m, gum_m=gum_m, Seg=Seg, SegT=SegT)


def build_params(key):
    kd, kg, kc = jax.random.split(key, 3)
    return {"d": init_conv_net_params(kd, D_DIMS, PAC),
            "g": init_generator_params(kg, G_DIMS, NOISE_DIM + COND_LEN),
            "c": init_conv_net_params(kc, C_DIMS, 1)}


# --------------------------------- forward passes --------------------------------


def _convnet_forward(params, slab, b_real, ohws):
    counts = tuple(b_real * o for o in ohws)
    kernel = make_convnet_kernel(len(ohws), counts, b_real)
    args = [slab]
    for blk in params["blocks"]:
        args += [blk["W"], blk["b"], blk["gamma"], blk["beta"], blk["S"], blk["ST"]]
    args += [params["Wf"], params["bf"]]
    return pl.pallas_call(
        kernel,
        out_shape=(jax.ShapeDtypeStruct((ROWS, LANE), jnp.float32),
                   jax.ShapeDtypeStruct((ROWS, LANE), jnp.float32)),
        in_specs=[VMEM_SPEC] * len(args),
        out_specs=(VMEM_SPEC, VMEM_SPEC),
    )(*args)


@jax.jit
def discriminator(params, data, cond):
    B = data.shape[0]
    assert B % PAC == 0, "The batch size should be divisible by pac parameter"
    x = jnp.concatenate([data, cond], axis=1)
    pad_c = D_SIDE * D_SIDE - x.shape[1]
    if pad_c:
        x = jnp.concatenate([x, jnp.zeros((B, pad_c), jnp.float32)], axis=1)
    rows = B // PAC
    xg = x.reshape(rows, PAC * D_SIDE * D_SIDE)          # NCHW flatten of (pac, side, side)
    slab = jnp.zeros((ROWS, LANE), jnp.float32).at[:rows, :xg.shape[1]].set(xg)
    logits, feat = _convnet_forward(params, slab, rows, D_OHWS)
    n_feat = D_DIMS[-1][0] * D_DIMS[-1][1] ** 2
    return {"logits": logits[:rows, :1], "features": feat[:rows, :n_feat]}


@jax.jit
def classifier(params, data):
    B = data.shape[0]
    slab = jnp.zeros((ROWS, LANE), jnp.float32).at[:B, :data.shape[1]].set(data)
    logits, _ = _convnet_forward(params, slab, B, C_OHWS)
    return {"c_logits": logits[:B, :1]}


@jax.jit
def generator(params, noise, cond, gumbel):
    B = noise.shape[0]
    z = jnp.concatenate([noise, cond], axis=1)
    z_slab = jnp.zeros((ROWS, LANE), jnp.float32).at[:B, :z.shape[1]].set(z)
    g_slab = jnp.zeros((ROWS, LANE), jnp.float32).at[:B, :gumbel.shape[1]].set(gumbel)
    counts = tuple(B * o for o in G_BN_OHWS)
    kernel = make_generator_kernel(counts, B)
    args = [z_slab, g_slab]
    for layer in params["layers"]:
        args += [layer["M"], layer["b"]]
        if "S" in layer:
            args += [layer["gamma"], layer["beta"], layer["S"], layer["ST"]]
    args += [params["tanh_m"], params["gum_m"], params["Seg"], params["SegT"]]
    logits_slab, fake_slab = pl.pallas_call(
        kernel,
        out_shape=(jax.ShapeDtypeStruct((ROWS, LANE), jnp.float32),
                   jax.ShapeDtypeStruct((ROWS, LANE), jnp.float32)),
        in_specs=[VMEM_SPEC] * len(args),
        out_specs=(VMEM_SPEC, VMEM_SPEC),
    )(*args)
    # TODO(synk): PyTorch's gumbel_softmax samples Gumbel noise internally; here the noise
    # is drawn deterministically with jax.random outside and added inside the kernel.
    return {"fake_data": fake_slab[:B, :N_FEATS],
            "fake_data_logits": logits_slab[:B, :N_FEATS]}


# ------------------------------------- main --------------------------------------

if __name__ == "__main__":
    key = jax.random.PRNGKey(0)
    k_params, k_data, k_lbl, k_noise, k_gum = jax.random.split(key, 5)

    params = build_params(k_params)

    data = jax.random.normal(k_data, (BATCH, N_FEATS), jnp.float32)
    labels = jax.random.randint(k_lbl, (BATCH,), 0, N_CLASS)
    cond = jax.nn.one_hot(labels, COND_LEN, dtype=jnp.float32)
    noise = jax.random.normal(k_noise, (BATCH, NOISE_DIM), jnp.float32)
    gumbel = jax.random.gumbel(k_gum, (BATCH, N_FEATS), jnp.float32)

    d_out = discriminator(params["d"], data, cond)
    g_out = generator(params["g"], noise, cond, gumbel)
    c_out = classifier(params["c"], data)

    jax.block_until_ready((d_out, g_out, c_out))

    assert d_out["logits"].shape == (BATCH // PAC, 1)
    assert d_out["features"].shape == (BATCH // PAC, D_DIMS[-1][0] * D_DIMS[-1][1] ** 2)
    assert g_out["fake_data"].shape == (BATCH, N_FEATS)
    assert g_out["fake_data_logits"].shape == (BATCH, N_FEATS)
    assert c_out["c_logits"].shape == (BATCH, 1)
    assert bool(jnp.all(jnp.isfinite(g_out["fake_data"])))
    # gumbel-softmax segments must sum to 1 per row
    fake_np = np.asarray(g_out["fake_data"])
    assert np.allclose(fake_np[:, 1:5].sum(axis=1), 1.0, atol=1e-3)
    assert np.allclose(fake_np[:, 12:14].sum(axis=1), 1.0, atol=1e-3)
    # sigmoid outputs in (0, 1)
    assert bool(jnp.all((d_out["logits"] > 0) & (d_out["logits"] < 1)))

    print("KERNEL_OK")
</pallas_src>

<mosaic_0001>
module attributes {stable_mosaic.version = 11 : i64} {
  func.func @kernel(%arg0: memref<8x128xf32, #tpu.memory_space<vmem>>, %arg1: memref<128x128xf32, #tpu.memory_space<vmem>>, %arg2: memref<1x128xf32, #tpu.memory_space<vmem>>, %arg3: memref<1x128xf32, #tpu.memory_space<vmem>>, %arg4: memref<1x128xf32, #tpu.memory_space<vmem>>, %arg5: memref<128x128xf32, #tpu.memory_space<vmem>>, %arg6: memref<128x128xf32, #tpu.memory_space<vmem>>, %arg7: memref<128x128xf32, #tpu.memory_space<vmem>>, %arg8: memref<1x128xf32, #tpu.memory_space<vmem>>, %arg9: memref<1x128xf32, #tpu.memory_space<vmem>>, %arg10: memref<1x128xf32, #tpu.memory_space<vmem>>, %arg11: memref<128x128xf32, #tpu.memory_space<vmem>>, %arg12: memref<128x128xf32, #tpu.memory_space<vmem>>, %arg13: memref<128x128xf32, #tpu.memory_space<vmem>>, %arg14: memref<1x128xf32, #tpu.memory_space<vmem>>, %arg15: memref<8x128xf32, #tpu.memory_space<vmem>>, %arg16: memref<8x128xf32, #tpu.memory_space<vmem>>) attributes {dimension_semantics = [], scalar_prefetch = 0 : i64, scratch_operands = 0 : i64, tpu.core_type = #tpu.core_type<tc>} {
    %0 = tpu.iota {dimensions = array<i32: 0>} : vector<8x128xi32>
    %c4_i32 = arith.constant 4 : i32
    %1 = vector.broadcast %c4_i32 : i32 to vector<8x128xi32>
    %2 = arith.cmpi slt, %0, %1 : vector<8x128xi32>
    %3 = arith.extui %2 : vector<8x128xi1> to vector<8x128xi32>
    %4 = arith.sitofp %3 : vector<8x128xi32> to vector<8x128xf32>
    %c0 = arith.constant 0 : index
    %c0_0 = arith.constant 0 : index
    %5 = vector.load %arg0[%c0, %c0_0] : memref<8x128xf32, #tpu.memory_space<vmem>>, vector<8x128xf32>
    %c0_1 = arith.constant 0 : index
    %c0_2 = arith.constant 0 : index
    %6 = vector.load %arg1[%c0_1, %c0_2] : memref<128x128xf32, #tpu.memory_space<vmem>>, vector<128x128xf32>
    %c0_3 = arith.constant 0 : index
    %c0_4 = arith.constant 0 : index
    %7 = vector.load %arg2[%c0_3, %c0_4] : memref<1x128xf32, #tpu.memory_space<vmem>>, vector<1x128xf32>
    %c0_5 = arith.constant 0 : index
    %c0_6 = arith.constant 0 : index
    %8 = vector.load %arg3[%c0_5, %c0_6] : memref<1x128xf32, #tpu.memory_space<vmem>>, vector<1x128xf32>
    %c0_7 = arith.constant 0 : index
    %c0_8 = arith.constant 0 : index
    %9 = vector.load %arg4[%c0_7, %c0_8] : memref<1x128xf32, #tpu.memory_space<vmem>>, vector<1x128xf32>
    %c0_9 = arith.constant 0 : index
    %c0_10 = arith.constant 0 : index
    %10 = vector.load %arg5[%c0_9, %c0_10] : memref<128x128xf32, #tpu.memory_space<vmem>>, vector<128x128xf32>
    %c0_11 = arith.constant 0 : index
    %c0_12 = arith.constant 0 : index
    %11 = vector.load %arg6[%c0_11, %c0_12] : memref<128x128xf32, #tpu.memory_space<vmem>>, vector<128x128xf32>
    %cst = arith.constant dense<0.000000e+00> : vector<8x128xf32>
    %12 = tpu.matmul %5, %6, %cst {dimension_numbers = #tpu.dot_dimension_numbers<[1], [0], [0], [1], [0, 0, 1, 1], [], []>} : vector<8x128xf32>, vector<128x128xf32>, vector<8x128xf32> -> vector<8x128xf32>
    %13 = vector.broadcast %7 : vector<1x128xf32> to vector<8x128xf32>
    %14 = arith.addf %12, %13 : vector<8x128xf32>
    %15 = arith.mulf %14, %4 : vector<8x128xf32>
    %cst_13 = arith.constant dense<0.000000e+00> : vector<8x128xf32>
    %16 = tpu.matmul %15, %10, %cst_13 {dimension_numbers = #tpu.dot_dimension_numbers<[1], [0], [0], [1], [0, 0, 1, 1], [], []>} : vector<8x128xf32>, vector<128x128xf32>, vector<8x128xf32> -> vector<8x128xf32>
    %cst_14 = arith.constant dense<0.000000e+00> : vector<128xf32>
    %17 = vector.multi_reduction <add>, %16, %cst_14 [0] : vector<8x128xf32> to vector<128xf32>
    %18 = vector.shape_cast %17 : vector<128xf32> to vector<1x128xf32>
    %19 = arith.mulf %15, %14 : vector<8x128xf32>
    %cst_15 = arith.constant dense<0.000000e+00> : vector<8x128xf32>
    %20 = tpu.matmul %19, %10, %cst_15 {dimension_numbers = #tpu.dot_dimension_numbers<[1], [0], [0], [1], [0, 0, 1, 1], [], []>} : vector<8x128xf32>, vector<128x128xf32>, vector<8x128xf32> -> vector<8x128xf32>
    %cst_16 = arith.constant dense<0.000000e+00> : vector<128xf32>
    %21 = vector.multi_reduction <add>, %20, %cst_16 [0] : vector<8x128xf32> to vector<128xf32>
    %22 = vector.shape_cast %21 : vector<128xf32> to vector<1x128xf32>
    %cst_17 = arith.constant 6.250000e-02 : f32
    %23 = vector.broadcast %cst_17 : f32 to vector<1x128xf32>
    %24 = arith.mulf %18, %23 : vector<1x128xf32>
    %cst_18 = arith.constant 6.250000e-02 : f32
    %25 = vector.broadcast %cst_18 : f32 to vector<1x128xf32>
    %26 = arith.mulf %22, %25 : vector<1x128xf32>
    %27 = arith.mulf %24, %24 : vector<1x128xf32>
    %28 = arith.subf %26, %27 : vector<1x128xf32>
    %cst_19 = arith.constant 9.99999974E-6 : f32
    %29 = vector.broadcast %cst_19 : f32 to vector<1x128xf32>
    %30 = arith.addf %28, %29 : vector<1x128xf32>
    %31 = math.rsqrt %30 : vector<1x128xf32>
    %32 = arith.mulf %8, %31 : vector<1x128xf32>
    %33 = arith.mulf %24, %32 : vector<1x128xf32>
    %34 = arith.subf %9, %33 : vector<1x128xf32>
    %cst_20 = arith.constant dense<0.000000e+00> : vector<1x128xf32>
    %35 = tpu.matmul %32, %11, %cst_20 {dimension_numbers = #tpu.dot_dimension_numbers<[1], [0], [0], [1], [0, 0, 1, 1], [], []>} : vector<1x128xf32>, vector<128x128xf32>, vector<1x128xf32> -> vector<1x128xf32>
    %cst_21 = arith.constant dense<0.000000e+00> : vector<1x128xf32>
    %36 = tpu.matmul %34, %11, %cst_21 {dimension_numbers = #tpu.dot_dimension_numbers<[1], [0], [0], [1], [0, 0, 1, 1], [], []>} : vector<1x128xf32>, vector<128x128xf32>, vector<1x128xf32> -> vector<1x128xf32>
    %37 = vector.broadcast %35 : vector<1x128xf32> to vector<8x128xf32>
    %38 = arith.mulf %14, %37 : vector<8x128xf32>
    %39 = vector.broadcast %36 : vector<1x128xf32> to vector<8x128xf32>
    %40 = arith.addf %38, %39 : vector<8x128xf32>
    %cst_22 = arith.constant 0.000000e+00 : f32
    %41 = vector.broadcast %cst_22 : f32 to vector<8x128xf32>
    %42 = arith.cmpf ogt, %40, %41 : vector<8x128xf32>
    %cst_23 = arith.constant 0.00999999977 : f32
    %43 = vector.broadcast %cst_23 : f32 to vector<8x128xf32>
    %44 = arith.mulf %43, %40 : vector<8x128xf32>
    %45 = arith.select %42, %40, %44 : vector<8x128xi1>, vector<8x128xf32>
    %c0_24 = arith.constant 0 : index
    %c0_25 = arith.constant 0 : index
    %46 = vector.load %arg7[%c0_24, %c0_25] : memref<128x128xf32, #tpu.memory_space<vmem>>, vector<128x128xf32>
    %c0_26 = arith.constant 0 : index
    %c0_27 = arith.constant 0 : index
    %47 = vector.load %arg8[%c0_26, %c0_27] : memref<1x128xf32, #tpu.memory_space<vmem>>, vector<1x128xf32>
    %c0_28 = arith.constant 0 : index
    %c0_29 = arith.constant 0 : index
    %48 = vector.load %arg9[%c0_28, %c0_29] : memref<1x128xf32, #tpu.memory_space<vmem>>, vector<1x128xf32>
    %c0_30 = arith.constant 0 : index
    %c0_31 = arith.constant 0 : index
    %49 = vector.load %arg10[%c0_30, %c0_31] : memref<1x128xf32, #tpu.memory_space<vmem>>, vector<1x128xf32>
    %c0_32 = arith.constant 0 : index
    %c0_33 = arith.constant 0 : index
    %50 = vector.load %arg11[%c0_32, %c0_33] : memref<128x128xf32, #tpu.memory_space<vmem>>, vector<128x128xf32>
    %c0_34 = arith.constant 0 : index
    %c0_35 = arith.constant 0 : index
    %51 = vector.load %arg12[%c0_34, %c0_35] : memref<128x128xf32, #tpu.memory_space<vmem>>, vector<128x128xf32>
    %cst_36 = arith.constant dense<0.000000e+00> : vector<8x128xf32>
    %52 = tpu.matmul %45, %46, %cst_36 {dimension_numbers = #tpu.dot_dimension_numbers<[1], [0], [0], [1], [0, 0, 1, 1], [], []>} : vector<8x128xf32>, vector<128x128xf32>, vector<8x128xf32> -> vector<8x128xf32>
    %53 = vector.broadcast %47 : vector<1x128xf32> to vector<8x128xf32>
    %54 = arith.addf %52, %53 : vector<8x128xf32>
    %55 = arith.mulf %54, %4 : vector<8x128xf32>
    %cst_37 = arith.constant dense<0.000000e+00> : vector<8x128xf32>
    %56 = tpu.matmul %55, %50, %cst_37 {dimension_numbers = #tpu.dot_dimension_numbers<[1], [0], [0], [1], [0, 0, 1, 1], [], []>} : vector<8x128xf32>, vector<128x128xf32>, vector<8x128xf32> -> vector<8x128xf32>
    %cst_38 = arith.constant dense<0.000000e+00> : vector<128xf32>
    %57 = vector.multi_reduction <add>, %56, %cst_38 [0] : vector<8x128xf32> to vector<128xf32>
    %58 = vector.shape_cast %57 : vector<128xf32> to vector<1x128xf32>
    %59 = arith.mulf %55, %54 : vector<8x128xf32>
    %cst_39 = arith.constant dense<0.000000e+00> : vector<8x128xf32>
    %60 = tpu.matmul %59, %50, %cst_39 {dimension_numbers = #tpu.dot_dimension_numbers<[1], [0], [0], [1], [0, 0, 1, 1], [], []>} : vector<8x128xf32>, vector<128x128xf32>, vector<8x128xf32> -> vector<8x128xf32>
    %cst_40 = arith.constant dense<0.000000e+00> : vector<128xf32>
    %61 = vector.multi_reduction <add>, %60, %cst_40 [0] : vector<8x128xf32> to vector<128xf32>
    %62 = vector.shape_cast %61 : vector<128xf32> to vector<1x128xf32>
    %cst_41 = arith.constant 2.500000e-01 : f32
    %63 = vector.broadcast %cst_41 : f32 to vector<1x128xf32>
    %64 = arith.mulf %58, %63 : vector<1x128xf32>
    %cst_42 = arith.constant 2.500000e-01 : f32
    %65 = vector.broadcast %cst_42 : f32 to vector<1x128xf32>
    %66 = arith.mulf %62, %65 : vector<1x128xf32>
    %67 = arith.mulf %64, %64 : vector<1x128xf32>
    %68 = arith.subf %66, %67 : vector<1x128xf32>
    %cst_43 = arith.constant 9.99999974E-6 : f32
    %69 = vector.broadcast %cst_43 : f32 to vector<1x128xf32>
    %70 = arith.addf %68, %69 : vector<1x128xf32>
    %71 = math.rsqrt %70 : vector<1x128xf32>
    %72 = arith.mulf %48, %71 : vector<1x128xf32>
    %73 = arith.mulf %64, %72 : vector<1x128xf32>
    %74 = arith.subf %49, %73 : vector<1x128xf32>
    %cst_44 = arith.constant dense<0.000000e+00> : vector<1x128xf32>
    %75 = tpu.matmul %72, %51, %cst_44 {dimension_numbers = #tpu.dot_dimension_numbers<[1], [0], [0], [1], [0, 0, 1, 1], [], []>} : vector<1x128xf32>, vector<128x128xf32>, vector<1x128xf32> -> vector<1x128xf32>
    %cst_45 = arith.constant dense<0.000000e+00> : vector<1x128xf32>
    %76 = tpu.matmul %74, %51, %cst_45 {dimension_numbers = #tpu.dot_dimension_numbers<[1], [0], [0], [1], [0, 0, 1, 1], [], []>} : vector<1x128xf32>, vector<128x128xf32>, vector<1x128xf32> -> vector<1x128xf32>
    %77 = vector.broadcast %75 : vector<1x128xf32> to vector<8x128xf32>
    %78 = arith.mulf %54, %77 : vector<8x128xf32>
    %79 = vector.broadcast %76 : vector<1x128xf32> to vector<8x128xf32>
    %80 = arith.addf %78, %79 : vector<8x128xf32>
    %cst_46 = arith.constant 0.000000e+00 : f32
    %81 = vector.broadcast %cst_46 : f32 to vector<8x128xf32>
    %82 = arith.cmpf ogt, %80, %81 : vector<8x128xf32>
    %cst_47 = arith.constant 0.00999999977 : f32
    %83 = vector.broadcast %cst_47 : f32 to vector<8x128xf32>
    %84 = arith.mulf %83, %80 : vector<8x128xf32>
    %85 = arith.select %82, %80, %84 : vector<8x128xi1>, vector<8x128xf32>
    %c0_48 = arith.constant 0 : index
    %c0_49 = arith.constant 0 : index
    %86 = vector.load %arg13[%c0_48, %c0_49] : memref<128x128xf32, #tpu.memory_space<vmem>>, vector<128x128xf32>
    %c0_50 = arith.constant 0 : index
    %c0_51 = arith.constant 0 : index
    %87 = vector.load %arg14[%c0_50, %c0_51] : memref<1x128xf32, #tpu.memory_space<vmem>>, vector<1x128xf32>
    %c0_52 = arith.constant 0 : index
    %c0_53 = arith.constant 0 : index
    %88 = vector.load %arg16[%c0_52, %c0_53] : memref<8x128xf32, #tpu.memory_space<vmem>>, vector<8x128xf32>
    tpu.vector_store %arg16[%c0_52, %c0_53], %85 {strides = array<i32>} : memref<8x128xf32, #tpu.memory_space<vmem>>, vector<8x128xf32>,
    %cst_54 = arith.constant dense<0.000000e+00> : vector<8x128xf32>
    %89 = tpu.matmul %85, %86, %cst_54 {dimension_numbers = #tpu.dot_dimension_numbers<[1], [0], [0], [1], [0, 0, 1, 1], [], []>} : vector<8x128xf32>, vector<128x128xf32>, vector<8x128xf32> -> vector<8x128xf32>
    %90 = vector.broadcast %87 : vector<1x128xf32> to vector<8x128xf32>
    %91 = arith.addf %89, %90 : vector<8x128xf32>
    %cst_55 = arith.constant 0.000000e+00 : f32
    %92 = vector.broadcast %cst_55 : f32 to vector<8x128xf32>
    %93 = arith.subf %92, %91 : vector<8x128xf32>
    %94 = math.exp %93 : vector<8x128xf32>
    %cst_56 = arith.constant 1.000000e+00 : f32
    %95 = vector.broadcast %cst_56 : f32 to vector<8x128xf32>
    %96 = arith.addf %95, %94 : vector<8x128xf32>
    %97 = tpu.reciprocal %96 {approx = true} : vector<8x128xf32> -> vector<8x128xf32>
    %c0_57 = arith.constant 0 : index
    %c0_58 = arith.constant 0 : index
    %98 = vector.load %arg15[%c0_57, %c0_58] : memref<8x128xf32, #tpu.memory_space<vmem>>, vector<8x128xf32>
    tpu.vector_store %arg15[%c0_57, %c0_58], %97 {strides = array<i32>} : memref<8x128xf32, #tpu.memory_space<vmem>>, vector<8x128xf32>,
    return
  }
}

</mosaic_0001>

<llo_original>
// kernel: discriminator.1
$region0: #{discriminator.1}
  #allocation0 [shape = 'u32[]', space=smem, size = 0x4, offset = 0x4, fixed_abs, tag = 'smem constant byte address 0x4 - core index']
  #allocation1 [shape = 'u32[144,128]{1,0:T(1,128)}', space=vmem, size = 0x12000, scoped, tag = 'internal scratch']
  %s0 = inlined_call_operand.vmem [shape: f32[8,128], index: 0, kind: input, shape index: {}]
  %s1 = inlined_call_operand.hbm [shape: f32[128,128], index: 1, kind: input, shape index: {}]
  %s2 = inlined_call_operand.vmem [shape: f32[1,128], index: 2, kind: input, shape index: {}]
  %s3 = inlined_call_operand.vmem [shape: f32[1,128], index: 3, kind: input, shape index: {}]
  %s4 = inlined_call_operand.vmem [shape: f32[1,128], index: 4, kind: input, shape index: {}]
  %s5 = inlined_call_operand.hbm [shape: f32[128,128], index: 5, kind: input, shape index: {}]
  %s6 = inlined_call_operand.hbm [shape: f32[128,128], index: 6, kind: input, shape index: {}]
  %s7 = inlined_call_operand.hbm [shape: f32[128,128], index: 7, kind: input, shape index: {}]
  %s8 = inlined_call_operand.vmem [shape: f32[1,128], index: 8, kind: input, shape index: {}]
  %s9 = inlined_call_operand.vmem [shape: f32[1,128], index: 9, kind: input, shape index: {}]
  %s10 = inlined_call_operand.vmem [shape: f32[1,128], index: 10, kind: input, shape index: {}]
  %s11 = inlined_call_operand.hbm [shape: f32[128,128], index: 11, kind: input, shape index: {}]
  %s12 = inlined_call_operand.hbm [shape: f32[128,128], index: 12, kind: input, shape index: {}]
  %s13 = inlined_call_operand.hbm [shape: f32[128,128], index: 13, kind: input, shape index: {}]
  %s14 = inlined_call_operand.vmem [shape: f32[1,128], index: 14, kind: input, shape index: {}]
  %s15 = inlined_call_operand.vmem [shape: f32[8,128], index: 15, kind: output, shape index: {0}]
  %s16 = inlined_call_operand.vmem [shape: f32[8,128], index: 16, kind: output, shape index: {1}]
  %17 = xla_tuple %s15, %s16
  %s18 = sld [smem:[#allocation0]]
  $region106: #{discriminator.1} parent=0
    _
  %s20 = ssub.s32 1, %s18
  %s21 = scalar_select 0, %s20, %s18
  $region1: #{discriminator.1} parent=0
    #allocation2 [shape = 'u8[65536]{0}', space=vmem, size = 0x10000, scoped, tag = 'input window, operand 1, single buffered']
    #allocation3 [shape = 's32[1]{0}', space=sflag, size = 0x4, scoped, tag = 'scoped memory for discriminator.1']
    #allocation4 [shape = 'u8[65536]{0}', space=vmem, size = 0x10000, scoped, tag = 'input window, operand 5, single buffered']
    #allocation5 [shape = 's32[1]{0}', space=sflag, size = 0x4, scoped, tag = 'scoped memory for discriminator.1']
    #allocation6 [shape = 'u8[65536]{0}', space=vmem, size = 0x10000, scoped, tag = 'input window, operand 6, single buffered']
    #allocation7 [shape = 'u8[65536]{0}', space=vmem, size = 0x10000, scoped, tag = 'input window, operand 7, single buffered']
    #allocation8 [shape = 's32[1]{0}', space=sflag, size = 0x4, scoped, tag = 'scoped memory for discriminator.1']
    #allocation9 [shape = 'u8[65536]{0}', space=vmem, size = 0x10000, scoped, tag = 'input window, operand 11, single buffered']
    #allocation10 [shape = 'u8[65536]{0}', space=vmem, size = 0x10000, scoped, tag = 'input window, operand 12, single buffered']
    #allocation11 [shape = 's32[1]{0}', space=sflag, size = 0x4, scoped, tag = 'scoped memory for discriminator.1']
    #allocation12 [shape = 'u8[65536]{0}', space=vmem, size = 0x10000, scoped, tag = 'input window, operand 13, single buffered']
    %22 = vsyncpa [#allocation3], 0
    %23 = vsyncpa [#allocation5], 0
    %24 = vsyncpa [#allocation8], 0
    %25 = vsyncpa [#allocation11], 0
    // Predicated region
    $region2: #{discriminator.1} parent=1 // pred_check
      _
    $region3: #{discriminator.1} parent=1 // pred_check_branch
      %27 = sbr.rel (0) target = $region5
    $region4: #{discriminator.1} parent=1 // pred_region
      _
    $region5: #{discriminator.1} parent=1 // pred_fallthru
      _
    // Predicated region
    $region6: #{discriminator.1} parent=1 // pred_check
      _
    $region7: #{discriminator.1} parent=1 // pred_check_branch
      %29 = sbr.rel (0) target = $region9
    $region8: #{discriminator.1} parent=1 // pred_region
      %s31 = ssub.s32 2048, 2048
      %32 = vsyncadd [#allocation3], %s31
      %s33 = sshll.u32 [#allocation2], 4
      %s34 = int_to_ptr.vmem [resolvable:$true] %s33
      %39 = dma.hbm_to_vmem [thread:$0]  %s1, 2048, %s34, [#allocation3], 128, 128, 8
    $region9: #{discriminator.1} parent=1 // pred_fallthru
      _
    // Predicated region
    $region10: #{discriminator.1} parent=1 // pred_check
      _
    $region11: #{discriminator.1} parent=1 // pred_check_branch
      %41 = sbr.rel (0) target = $region13
    $region12: #{discriminator.1} parent=1 // pred_region
      _
    $region13: #{discriminator.1} parent=1 // pred_fallthru
      _
    // Predicated region
    $region14: #{discriminator.1} parent=1 // pred_check
      _
    $region15: #{discriminator.1} parent=1 // pred_check_branch
      %43 = sbr.rel (0) target = $region17
    $region16: #{discriminator.1} parent=1 // pred_region
      _
    $region17: #{discriminator.1} parent=1 // pred_fallthru
      _
    // Predicated region
    $region18: #{discriminator.1} parent=1 // pred_check
      _
    $region19: #{discriminator.1} parent=1 // pred_check_branch
      %45 = sbr.rel (0) target = $region21
    $region20: #{discriminator.1} parent=1 // pred_region
      _
    $region21: #{discriminator.1} parent=1 // pred_fallthru
      _
    // Predicated region
    $region22: #{discriminator.1} parent=1 // pred_check
      _
    $region23: #{discriminator.1} parent=1 // pred_check_branch
      %47 = sbr.rel (0) target = $region25
    $region24: #{discriminator.1} parent=1 // pred_region
      %s49 = ssub.s32 2048, 2048
      %50 = vsyncadd [#allocation5], %s49
      %s51 = sshll.u32 [#allocation4], 4
      %s52 = int_to_ptr.vmem [resolvable:$true] %s51
      %57 = dma.hbm_to_vmem [thread:$0]  %s5, 2048, %s52, [#allocation5], 128, 128, 8
    $region25: #{discriminator.1} parent=1 // pred_fallthru
      _
    // Predicated region
    $region26: #{discriminator.1} parent=1 // pred_check
      _
    $region27: #{discriminator.1} parent=1 // pred_check_branch
      %59 = sbr.rel (0) target = $region29
    $region28: #{discriminator.1} parent=1 // pred_region
      %s61 = ssub.s32 2048, 2048
      %62 = vsyncadd [#allocation5], %s61
      %s63 = sshll.u32 [#allocation6], 4
      %s64 = int_to_ptr.vmem [resolvable:$true] %s63
      %69 = dma.hbm_to_vmem [thread:$0]  %s6, 2048, %s64, [#allocation5], 128, 128, 8
    $region29: #{discriminator.1} parent=1 // pred_fallthru
      _
    // Predicated region
    $region30: #{discriminator.1} parent=1 // pred_check
      _
    $region31: #{discriminator.1} parent=1 // pred_check_branch
      %71 = sbr.rel (0) target = $region33
    $region32: #{discriminator.1} parent=1 // pred_region
      %s73 = ssub.s32 2048, 2048
      %74 = vsyncadd [#allocation8], %s73
      %s75 = sshll.u32 [#allocation7], 4
      %s76 = int_to_ptr.vmem [resolvable:$true] %s75
      %81 = dma.hbm_to_vmem [thread:$0]  %s7, 2048, %s76, [#allocation8], 128, 128, 8
    $region33: #{discriminator.1} parent=1 // pred_fallthru
      _
    // Predicated region
    $region34: #{discriminator.1} parent=1 // pred_check
      _
    $region35: #{discriminator.1} parent=1 // pred_check_branch
      %83 = sbr.rel (0) target = $region37
    $region36: #{discriminator.1} parent=1 // pred_region
      _
    $region37: #{discriminator.1} parent=1 // pred_fallthru
      _
    // Predicated region
    $region38: #{discriminator.1} parent=1 // pred_check
      _
    $region39: #{discriminator.1} parent=1 // pred_check_branch
      %85 = sbr.rel (0) target = $region41
    $region40: #{discriminator.1} parent=1 // pred_region
      _
    $region41: #{discriminator.1} parent=1 // pred_fallthru
      _
    // Predicated region
    $region42: #{discriminator.1} parent=1 // pred_check
      _
    $region43: #{discriminator.1} parent=1 // pred_check_branch
      %87 = sbr.rel (0) target = $region45
    $region44: #{discriminator.1} parent=1 // pred_region
      _
    $region45: #{discriminator.1} parent=1 // pred_fallthru
      _
    // Predicated region
    $region46: #{discriminator.1} parent=1 // pred_check
      _
    $region47: #{discriminator.1} parent=1 // pred_check_branch
      %89 = sbr.rel (0) target = $region49
    $region48: #{discriminator.1} parent=1 // pred_region
      %s91 = ssub.s32 2048, 2048
      %92 = vsyncadd [#allocation8], %s91
      %s93 = sshll.u32 [#allocation9], 4
      %s94 = int_to_ptr.vmem [resolvable:$true] %s93
      %99 = dma.hbm_to_vmem [thread:$0]  %s11, 2048, %s94, [#allocation8], 128, 128, 8
    $region49: #{discriminator.1} parent=1 // pred_fallthru
      _
    // Predicated region
    $region50: #{discriminator.1} parent=1 // pred_check
      _
    $region51: #{discriminator.1} parent=1 // pred_check_branch
      %101 = sbr.rel (0) target = $region53
    $region52: #{discriminator.1} parent=1 // pred_region
      %s103 = ssub.s32 2048, 2048
      %104 = vsyncadd [#allocation11], %s103
      %s105 = sshll.u32 [#allocation10], 4
      %s106 = int_to_ptr.vmem [resolvable:$true] %s105
      %111 = dma.hbm_to_vmem [thread:$0]  %s12, 2048, %s106, [#allocation11], 128, 128, 8
    $region53: #{discriminator.1} parent=1 // pred_fallthru
      _
    // Predicated region
    $region54: #{discriminator.1} parent=1 // pred_check
      _
    $region55: #{discriminator.1} parent=1 // pred_check_branch
      %113 = sbr.rel (0) target = $region57
    $region56: #{discriminator.1} parent=1 // pred_region
      %s115 = ssub.s32 2048, 2048
      %116 = vsyncadd [#allocation11], %s115
      %s117 = sshll.u32 [#allocation12], 4
      %s118 = int_to_ptr.vmem [resolvable:$true] %s117
      %123 = dma.hbm_to_vmem [thread:$0]  %s13, 2048, %s118, [#allocation11], 128, 128, 8
    $region57: #{discriminator.1} parent=1 // pred_fallthru
      _
    // Predicated region
    $region58: #{discriminator.1} parent=1 // pred_check
      _
    $region59: #{discriminator.1} parent=1 // pred_check_branch
      %125 = sbr.rel (0) target = $region61
    $region60: #{discriminator.1} parent=1 // pred_region
      _
    $region61: #{discriminator.1} parent=1 // pred_fallthru
      _
    // Predicated region
    $region62: #{discriminator.1} parent=1 // pred_check
      _
    $region63: #{discriminator.1} parent=1 // pred_check_branch
      %127 = sbr.rel (0) target = $region65
    $region64: #{discriminator.1} parent=1 // pred_region
      %128 = dma.done [#allocation3], 2048
    $region65: #{discriminator.1} parent=1 // pred_fallthru
      _
    // Predicated region
    $region66: #{discriminator.1} parent=1 // pred_check
      _
    $region67: #{discriminator.1} parent=1 // pred_check_branch
      %130 = sbr.rel (0) target = $region69
    $region68: #{discriminator.1} parent=1 // pred_region
      %131 = dma.done [#allocation5], 2048
    $region69: #{discriminator.1} parent=1 // pred_fallthru
      _
    // Predicated region
    $region70: #{discriminator.1} parent=1 // pred_check
      _
    $region71: #{discriminator.1} parent=1 // pred_check_branch
      %133 = sbr.rel (0) target = $region73
    $region72: #{discriminator.1} parent=1 // pred_region
      %134 = dma.done [#allocation5], 2048
    $region73: #{discriminator.1} parent=1 // pred_fallthru
      _
    // Predicated region
    $region74: #{discriminator.1} parent=1 // pred_check
      _
    $region75: #{discriminator.1} parent=1 // pred_check_branch
      %136 = sbr.rel (0) target = $region77
    $region76: #{discriminator.1} parent=1 // pred_region
      %137 = dma.done [#allocation8], 2048
    $region77: #{discriminator.1} parent=1 // pred_fallthru
      _
    // Predicated region
    $region78: #{discriminator.1} parent=1 // pred_check
      _
    $region79: #{discriminator.1} parent=1 // pred_check_branch
      %139 = sbr.rel (0) target = $region81
    $region80: #{discriminator.1} parent=1 // pred_region
      %140 = dma.done [#allocation8], 2048
    $region81: #{discriminator.1} parent=1 // pred_fallthru
      _
    // Predicated region
    $region82: #{discriminator.1} parent=1 // pred_check
      _
    $region83: #{discriminator.1} parent=1 // pred_check_branch
      %142 = sbr.rel (0) target = $region85
    $region84: #{discriminator.1} parent=1 // pred_region
      %143 = dma.done [#allocation11], 2048
    $region85: #{discriminator.1} parent=1 // pred_fallthru
      _
    // Predicated region
    $region86: #{discriminator.1} parent=1 // pred_check
      _
    $region87: #{discriminator.1} parent=1 // pred_check_branch
      %145 = sbr.rel (0) target = $region89
    $region88: #{discriminator.1} parent=1 // pred_region
      %146 = dma.done [#allocation11], 2048
    $region89: #{discriminator.1} parent=1 // pred_fallthru
      _
    %v147 = vlaneseq
    %v148 = vshrl.u32 %v147, 7
    %vm149 = vcmp.lt.s32.totalorder %v148, 4
    %v150 = vsel %vm149, 1, 0
    %v151 = vcvt.s32.f32 %v150
    %v152 = vld [vmem:[%s0] sm:$0xff]
    %v153 = vld [vmem:[#allocation2] sm:$0xff]
    %v154 = vld [vmem:[#allocation2 + $0x8] sm:$0xff]
    %v155 = vld [vmem:[#allocation2 + $0x10] sm:$0xff]
    %v156 = vld [vmem:[#allocation2 + $0x18] sm:$0xff]
    %v157 = vld [vmem:[#allocation2 + $0x20] sm:$0xff]
    %v158 = vld [vmem:[#allocation2 + $0x28] sm:$0xff]
    %v159 = vld [vmem:[#allocation2 + $0x30] sm:$0xff]
    %v160 = vld [vmem:[#allocation2 + $0x38] sm:$0xff]
    %v161 = vld [vmem:[#allocation2 + $0x40] sm:$0xff]
    %v162 = vld [vmem:[#allocation2 + $0x48] sm:$0xff]
    %v163 = vld [vmem:[#allocation2 + $0x50] sm:$0xff]
    %v164 = vld [vmem:[#allocation2 + $0x58] sm:$0xff]
    %v165 = vld [vmem:[#allocation2 + $0x60] sm:$0xff]
    %v166 = vld [vmem:[#allocation2 + $0x68] sm:$0xff]
    %v167 = vld [vmem:[#allocation2 + $0x70] sm:$0xff]
    %v168 = vld [vmem:[#allocation2 + $0x78] sm:$0xff]
    %v169 = vld [vmem:[%s2] sm:$0x1]
    %v170 = vld [vmem:[%s3] sm:$0x1]
    %v171 = vld [vmem:[%s4] sm:$0x1]
    %v172 = vld [vmem:[#allocation4] sm:$0xff]
    %v173 = vld [vmem:[#allocation4 + $0x8] sm:$0xff]
    %v174 = vld [vmem:[#allocation4 + $0x10] sm:$0xff]
    %v175 = vld [vmem:[#allocation4 + $0x18] sm:$0xff]
    %v176 = vld [vmem:[#allocation4 + $0x20] sm:$0xff]
    %v177 = vld [vmem:[#allocation4 + $0x28] sm:$0xff]
    %v178 = vld [vmem:[#allocation4 + $0x30] sm:$0xff]
    %v179 = vld [vmem:[#allocation4 + $0x38] sm:$0xff]
    %v180 = vld [vmem:[#allocation4 + $0x40] sm:$0xff]
    %v181 = vld [vmem:[#allocation4 + $0x48] sm:$0xff]
    %v182 = vld [vmem:[#allocation4 + $0x50] sm:$0xff]
    %v183 = vld [vmem:[#allocation4 + $0x58] sm:$0xff]
    %v184 = vld [vmem:[#allocation4 + $0x60] sm:$0xff]
    %v185 = vld [vmem:[#allocation4 + $0x68] sm:$0xff]
    %v186 = vld [vmem:[#allocation4 + $0x70] sm:$0xff]
    %v187 = vld [vmem:[#allocation4 + $0x78] sm:$0xff]
    %v188 = vld [vmem:[#allocation6] sm:$0xff]
    %v189 = vld [vmem:[#allocation6 + $0x8] sm:$0xff]
    %v190 = vld [vmem:[#allocation6 + $0x10] sm:$0xff]
    %v191 = vld [vmem:[#allocation6 + $0x18] sm:$0xff]
    %v192 = vld [vmem:[#allocation6 + $0x20] sm:$0xff]
    %v193 = vld [vmem:[#allocation6 + $0x28] sm:$0xff]
    %v194 = vld [vmem:[#allocation6 + $0x30] sm:$0xff]
    %v195 = vld [vmem:[#allocation6 + $0x38] sm:$0xff]
    %v196 = vld [vmem:[#allocation6 + $0x40] sm:$0xff]
    %v197 = vld [vmem:[#allocation6 + $0x48] sm:$0xff]
    %v198 = vld [vmem:[#allocation6 + $0x50] sm:$0xff]
    %v199 = vld [vmem:[#allocation6 + $0x58] sm:$0xff]
    %v200 = vld [vmem:[#allocation6 + $0x60] sm:$0xff]
    %v201 = vld [vmem:[#allocation6 + $0x68] sm:$0xff]
    %v202 = vld [vmem:[#allocation6 + $0x70] sm:$0xff]
    %v203 = vld [vmem:[#allocation6 + $0x78] sm:$0xff]
    %v205 = vlaneseq
    %v206 = vshrl.u32 %v205, 7
    %v207 = vsub.s32 0, %v206
    %v208 = vrot.slane %v169, %v207
    %210 = vmatprep.subr.mxu0 0.0
    %211 = vmatpush1.msra.mxu0 %v153
    %212 = vmatprep.subr.mxu0 0.0
    %213 = vmatpush1.msra.mxu0 %v154
    %214 = vmatprep.subr.mxu0 0.0
    %215 = vmatpush1.msra.mxu0 %v155
    %216 = vmatprep.subr.mxu0 0.0
    %217 = vmatpush1.msra.mxu0 %v156
    %218 = vmatprep.subr.mxu0 0.0
    %219 = vmatpush1.msra.mxu0 %v157
    %220 = vmatprep.subr.mxu0 0.0
    %221 = vmatpush1.msra.mxu0 %v158
    %222 = vmatprep.subr.mxu0 0.0
    %223 = vmatpush1.msra.mxu0 %v159
    %224 = vmatprep.subr.mxu0 0.0
    %225 = vmatpush1.msra.mxu0 %v160
    %226 = vmatprep.subr.mxu0 0.0
    %227 = vmatpush1.msra.mxu0 %v161
    %228 = vmatprep.subr.mxu0 0.0
    %229 = vmatpush1.msra.mxu0 %v162
    %230 = vmatprep.subr.mxu0 0.0
    %231 = vmatpush1.msra.mxu0 %v163
    %232 = vmatprep.subr.mxu0 0.0
    %233 = vmatpush1.msra.mxu0 %v164
    %234 = vmatprep.subr.mxu0 0.0
    %235 = vmatpush1.msra.mxu0 %v165
    %236 = vmatprep.subr.mxu0 0.0
    %237 = vmatpush1.msra.mxu0 %v166
    %238 = vmatprep.subr.mxu0 0.0
    %239 = vmatpush1.msra.mxu0 %v167
    %240 = vmatprep.subr.mxu0 0.0
    %241 = vmatpush1.msra.mxu0 %v168
    %242 = vmatprep.subr.mxu0 0.0
    %243 = vmatpush1.msra.mxu0 0.0
    %244 = vmatprep.subr.mxu0 0.0
    %245 = vmatpush1.msra.mxu0 0.0
    %246 = vmatprep.subr.mxu0 0.0
    %247 = vmatpush1.msra.mxu0 0.0
    %248 = vmatprep.subr.mxu0 0.0
    %249 = vmatpush1.msra.mxu0 0.0
    %250 = vmatprep.subr.mxu0 0.0
    %251 = vmatpush1.msra.mxu0 0.0
    %252 = vmatprep.subr.mxu0 0.0
    %253 = vmatpush1.msra.mxu0 0.0
    %254 = vmatprep.subr.mxu0 0.0
    %255 = vmatpush1.msra.mxu0 0.0
    %256 = vmatprep.subr.mxu0 0.0
    %257 = vmatpush1.msra.mxu0 0.0
    %258 = vmatprep.subr.mxu0 0.0
    %259 = vmatpush1.msra.mxu0 0.0
    %260 = vmatprep.subr.mxu0 0.0
    %261 = vmatpush1.msra.mxu0 0.0
    %262 = vmatprep.subr.mxu0 0.0
    %263 = vmatpush1.msra.mxu0 0.0
    %264 = vmatprep.subr.mxu0 0.0
    %265 = vmatpush1.msra.mxu0 0.0
    %266 = vmatprep.subr.mxu0 0.0
    %267 = vmatpush1.msra.mxu0 0.0
    %268 = vmatprep.subr.mxu0 0.0
    %269 = vmatpush1.msra.mxu0 0.0
    %270 = vmatprep.subr.mxu0 0.0
    %271 = vmatpush1.msra.mxu0 0.0
    %272 = vmatprep.subr.mxu0 0.0
    %273 = vmatpush1.msra.mxu0 0.0
    %274 = vmatprep.mubr.f32.mxu0 0.0
    %275 = vmatmul.mubr.f32.gmra.mrb[0].mxu0 %v152
    %v276 = vpop.f32.mrb[0].mxu0
    %v277 = vadd.f32 %v208, %v276
    %v278 = vpop.f32.mrb[0].mxu0
    %279 = vdwg.mxu0
    %v280 = vmul.f32 %v277, %v151
    %281 = vmatprep.subr.mxu0 0.0
    %282 = vmatpush1.msra.mxu0 %v172
    %283 = vmatprep.subr.mxu0 0.0
    %284 = vmatpush1.msra.mxu0 %v173
    %285 = vmatprep.subr.mxu0 0.0
    %286 = vmatpush1.msra.mxu0 %v174
    %287 = vmatprep.subr.mxu0 0.0
    %288 = vmatpush1.msra.mxu0 %v175
    %289 = vmatprep.subr.mxu0 0.0
    %290 = vmatpush1.msra.mxu0 %v176
    %291 = vmatprep.subr.mxu0 0.0
    %292 = vmatpush1.msra.mxu0 %v177
    %293 = vmatprep.subr.mxu0 0.0
    %294 = vmatpush1.msra.mxu0 %v178
    %295 = vmatprep.subr.mxu0 0.0
    %296 = vmatpush1.msra.mxu0 %v179
    %297 = vmatprep.subr.mxu0 0.0
    %298 = vmatpush1.msra.mxu0 %v180
    %299 = vmatprep.subr.mxu0 0.0
    %300 = vmatpush1.msra.mxu0 %v181
    %301 = vmatprep.subr.mxu0 0.0
    %302 = vmatpush1.msra.mxu0 %v182
    %303 = vmatprep.subr.mxu0 0.0
    %304 = vmatpush1.msra.mxu0 %v183
    %305 = vmatprep.subr.mxu0 0.0
    %306 = vmatpush1.msra.mxu0 %v184
    %307 = vmatprep.subr.mxu0 0.0
    %308 = vmatpush1.msra.mxu0 %v185
    %309 = vmatprep.subr.mxu0 0.0
    %310 = vmatpush1.msra.mxu0 %v186
    %311 = vmatprep.subr.mxu0 0.0
    %312 = vmatpush1.msra.mxu0 %v187
    %313 = vmatprep.subr.mxu0 0.0
    %314 = vmatpush1.msra.mxu0 0.0
    %315 = vmatprep.subr.mxu0 0.0
    %316 = vmatpush1.msra.mxu0 0.0
    %317 = vmatprep.subr.mxu0 0.0
    %318 = vmatpush1.msra.mxu0 0.0
    %319 = vmatprep.subr.mxu0 0.0
    %320 = vmatpush1.msra.mxu0 0.0
    %321 = vmatprep.subr.mxu0 0.0
    %322 = vmatpush1.msra.mxu0 0.0
    %323 = vmatprep.subr.mxu0 0.0
    %324 = vmatpush1.msra.mxu0 0.0
    %325 = vmatprep.subr.mxu0 0.0
    %326 = vmatpush1.msra.mxu0 0.0
    %327 = vmatprep.subr.mxu0 0.0
    %328 = vmatpush1.msra.mxu0 0.0
    %329 = vmatprep.subr.mxu0 0.0
    %330 = vmatpush1.msra.mxu0 0.0
    %331 = vmatprep.subr.mxu0 0.0
    %332 = vmatpush1.msra.mxu0 0.0
    %333 = vmatprep.subr.mxu0 0.0
    %334 = vmatpush1.msra.mxu0 0.0
    %335 = vmatprep.subr.mxu0 0.0
    %336 = vmatpush1.msra.mxu0 0.0
    %337 = vmatprep.subr.mxu0 0.0
    %338 = vmatpush1.msra.mxu0 0.0
    %339 = vmatprep.subr.mxu0 0.0
    %340 = vmatpush1.msra.mxu0 0.0
    %341 = vmatprep.subr.mxu0 0.0
    %342 = vmatpush1.msra.mxu0 0.0
    %343 = vmatprep.subr.mxu0 0.0
    %344 = vmatpush1.msra.mxu0 0.0
    %345 = vmatprep.mubr.f32.mxu0 0.0
    %346 = vmatmul.mubr.f32.gmra.mrb[0].mxu0 %v280
    %v347 = vpop.f32.mrb[0].mxu0
    %v348 = vadd.f32 0.0, %v347
    %v349 = vpop.f32.mrb[0].mxu0
    %350 = vdwg.mxu0
    %v351 = vrot.slane %v348, 4
    %v352 = vadd.f32 %v348, %v351
    %v353 = vrot.slane %v352, 2
    %v354 = vadd.f32 %v352, %v353
    %v355 = vrot.slane %v354, 1
    %v356 = vadd.f32 %v354, %v355
    %v357 = vmul.f32 %v280, %v277
    %358 = vmatprep.subr.mxu0 0.0
    %359 = vmatpush1.msra.mxu0 %v172
    %360 = vmatprep.subr.mxu0 0.0
    %361 = vmatpush1.msra.mxu0 %v173
    %362 = vmatprep.subr.mxu0 0.0
    %363 = vmatpush1.msra.mxu0 %v174
    %364 = vmatprep.subr.mxu0 0.0
    %365 = vmatpush1.msra.mxu0 %v175
    %366 = vmatprep.subr.mxu0 0.0
    %367 = vmatpush1.msra.mxu0 %v176
    %368 = vmatprep.subr.mxu0 0.0
    %369 = vmatpush1.msra.mxu0 %v177
    %370 = vmatprep.subr.mxu0 0.0
    %371 = vmatpush1.msra.mxu0 %v178
    %372 = vmatprep.subr.mxu0 0.0
    %373 = vmatpush1.msra.mxu0 %v179
    %374 = vmatprep.subr.mxu0 0.0
    %375 = vmatpush1.msra.mxu0 %v180
    %376 = vmatprep.subr.mxu0 0.0
    %377 = vmatpush1.msra.mxu0 %v181
    %378 = vmatprep.subr.mxu0 0.0
    %379 = vmatpush1.msra.mxu0 %v182
    %380 = vmatprep.subr.mxu0 0.0
    %381 = vmatpush1.msra.mxu0 %v183
    %382 = vmatprep.subr.mxu0 0.0
    %383 = vmatpush1.msra.mxu0 %v184
    %384 = vmatprep.subr.mxu0 0.0
    %385 = vmatpush1.msra.mxu0 %v185
    %386 = vmatprep.subr.mxu0 0.0
    %387 = vmatpush1.msra.mxu0 %v186
    %388 = vmatprep.subr.mxu0 0.0
    %389 = vmatpush1.msra.mxu0 %v187
    %390 = vmatprep.subr.mxu0 0.0
    %391 = vmatpush1.msra.mxu0 0.0
    %392 = vmatprep.subr.mxu0 0.0
    %393 = vmatpush1.msra.mxu0 0.0
    %394 = vmatprep.subr.mxu0 0.0
    %395 = vmatpush1.msra.mxu0 0.0
    %396 = vmatprep.subr.mxu0 0.0
    %397 = vmatpush1.msra.mxu0 0.0
    %398 = vmatprep.subr.mxu0 0.0
    %399 = vmatpush1.msra.mxu0 0.0
    %400 = vmatprep.subr.mxu0 0.0
    %401 = vmatpush1.msra.mxu0 0.0
    %402 = vmatprep.subr.mxu0 0.0
    %403 = vmatpush1.msra.mxu0 0.0
    %404 = vmatprep.subr.mxu0 0.0
    %405 = vmatpush1.msra.mxu0 0.0
    %406 = vmatprep.subr.mxu0 0.0
    %407 = vmatpush1.msra.mxu0 0.0
    %408 = vmatprep.subr.mxu0 0.0
    %409 = vmatpush1.msra.mxu0 0.0
    %410 = vmatprep.subr.mxu0 0.0
    %411 = vmatpush1.msra.mxu0 0.0
    %412 = vmatprep.subr.mxu0 0.0
    %413 = vmatpush1.msra.mxu0 0.0
    %414 = vmatprep.subr.mxu0 0.0
    %415 = vmatpush1.msra.mxu0 0.0
    %416 = vmatprep.subr.mxu0 0.0
    %417 = vmatpush1.msra.mxu0 0.0
    %418 = vmatprep.subr.mxu0 0.0
    %419 = vmatpush1.msra.mxu0 0.0
    %420 = vmatprep.subr.mxu0 0.0
    %421 = vmatpush1.msra.mxu0 0.0
    %422 = vmatprep.mubr.f32.mxu0 0.0
    %423 = vmatmul.mubr.f32.gmra.mrb[0].mxu0 %v357
    %v424 = vpop.f32.mrb[0].mxu0
    %v425 = vadd.f32 0.0, %v424
    %v426 = vpop.f32.mrb[0].mxu0
    %427 = vdwg.mxu0
    %v428 = vrot.slane %v425, 4
    %v429 = vadd.f32 %v425, %v428
    %v430 = vrot.slane %v429, 2
    %v431 = vadd.f32 %v429, %v430
    %v432 = vrot.slane %v431, 1
    %v433 = vadd.f32 %v431, %v432
    %v434 = vmul.f32 %v356, 0.0625
    %v435 = vmul.f32 %v433, 0.0625
    %v436 = vmul.f32 %v434, %v434
    %v437 = vsub.f32 %v435, %v436
    %v438 = vadd.f32 %v437, 1e-05
    %v439 = vrsqrt.pop %v438
    %v440 = vmul.f32 %v170, %v439
    %v441 = vmul.f32 %v434, %v440
    %v442 = vsub.f32 %v171, %v441
    %443 = vmatprep.subr.mxu0 0.0
    %444 = vmatpush1.msra.mxu0 %v188
    %445 = vmatprep.subr.mxu0 0.0
    %446 = vmatpush1.msra.mxu0 %v189
    %447 = vmatprep.subr.mxu0 0.0
    %448 = vmatpush1.msra.mxu0 %v190
    %449 = vmatprep.subr.mxu0 0.0
    %450 = vmatpush1.msra.mxu0 %v191
    %451 = vmatprep.subr.mxu0 0.0
    %452 = vmatpush1.msra.mxu0 %v192
    %453 = vmatprep.subr.mxu0 0.0
    %454 = vmatpush1.msra.mxu0 %v193
    %455 = vmatprep.subr.mxu0 0.0
    %456 = vmatpush1.msra.mxu0 %v194
    %457 = vmatprep.subr.mxu0 0.0
    %458 = vmatpush1.msra.mxu0 %v195
    %459 = vmatprep.subr.mxu0 0.0
    %460 = vmatpush1.msra.mxu0 %v196
    %461 = vmatprep.subr.mxu0 0.0
    %462 = vmatpush1.msra.mxu0 %v197
    %463 = vmatprep.subr.mxu0 0.0
    %464 = vmatpush1.msra.mxu0 %v198
    %465 = vmatprep.subr.mxu0 0.0
    %466 = vmatpush1.msra.mxu0 %v199
    %467 = vmatprep.subr.mxu0 0.0
    %468 = vmatpush1.msra.mxu0 %v200
    %469 = vmatprep.subr.mxu0 0.0
    %470 = vmatpush1.msra.mxu0 %v201
    %471 = vmatprep.subr.mxu0 0.0
    %472 = vmatpush1.msra.mxu0 %v202
    %473 = vmatprep.subr.mxu0 0.0
    %474 = vmatpush1.msra.mxu0 %v203
    %475 = vmatprep.subr.mxu0 0.0
    %476 = vmatpush1.msra.mxu0 0.0
    %477 = vmatprep.subr.mxu0 0.0
    %478 = vmatpush1.msra.mxu0 0.0
    %479 = vmatprep.subr.mxu0 0.0
    %480 = vmatpush1.msra.mxu0 0.0
    %481 = vmatprep.subr.mxu0 0.0
    %482 = vmatpush1.msra.mxu0 0.0
    %483 = vmatprep.subr.mxu0 0.0
    %484 = vmatpush1.msra.mxu0 0.0
    %485 = vmatprep.subr.mxu0 0.0
    %486 = vmatpush1.msra.mxu0 0.0
    %487 = vmatprep.subr.mxu0 0.0
    %488 = vmatpush1.msra.mxu0 0.0
    %489 = vmatprep.subr.mxu0 0.0
    %490 = vmatpush1.msra.mxu0 0.0
    %491 = vmatprep.subr.mxu0 0.0
    %492 = vmatpush1.msra.mxu0 0.0
    %493 = vmatprep.subr.mxu0 0.0
    %494 = vmatpush1.msra.mxu0 0.0
    %495 = vmatprep.subr.mxu0 0.0
    %496 = vmatpush1.msra.mxu0 0.0
    %497 = vmatprep.subr.mxu0 0.0
    %498 = vmatpush1.msra.mxu0 0.0
    %499 = vmatprep.subr.mxu0 0.0
    %500 = vmatpush1.msra.mxu0 0.0
    %501 = vmatprep.subr.mxu0 0.0
    %502 = vmatpush1.msra.mxu0 0.0
    %503 = vmatprep.subr.mxu0 0.0
    %504 = vmatpush1.msra.mxu0 0.0
    %505 = vmatprep.subr.mxu0 0.0
    %506 = vmatpush1.msra.mxu0 0.0
    %507 = vmatprep.mubr.f32.mxu0 0.0
    %508 = vmatmul.mubr.f32.gmra.mrb[0].mxu0 %v440
    %v509 = vpop.f32.mrb[0].mxu0
    %v510 = vadd.f32 0.0, %v509
    %v511 = vpop.f32.mrb[0].mxu0
    %512 = vdwg.mxu0
    %513 = vmatprep.subr.mxu0 0.0
    %514 = vmatpush1.msra.mxu0 %v188
    %515 = vmatprep.subr.mxu0 0.0
    %516 = vmatpush1.msra.mxu0 %v189
    %517 = vmatprep.subr.mxu0 0.0
    %518 = vmatpush1.msra.mxu0 %v190
    %519 = vmatprep.subr.mxu0 0.0
    %520 = vmatpush1.msra.mxu0 %v191
    %521 = vmatprep.subr.mxu0 0.0
    %522 = vmatpush1.msra.mxu0 %v192
    %523 = vmatprep.subr.mxu0 0.0
    %524 = vmatpush1.msra.mxu0 %v193
    %525 = vmatprep.subr.mxu0 0.0
    %526 = vmatpush1.msra.mxu0 %v194
    %527 = vmatprep.subr.mxu0 0.0
    %528 = vmatpush1.msra.mxu0 %v195
    %529 = vmatprep.subr.mxu0 0.0
    %530 = vmatpush1.msra.mxu0 %v196
    %531 = vmatprep.subr.mxu0 0.0
    %532 = vmatpush1.msra.mxu0 %v197
    %533 = vmatprep.subr.mxu0 0.0
    %534 = vmatpush1.msra.mxu0 %v198
    %535 = vmatprep.subr.mxu0 0.0
    %536 = vmatpush1.msra.mxu0 %v199
    %537 = vmatprep.subr.mxu0 0.0
    %538 = vmatpush1.msra.mxu0 %v200
    %539 = vmatprep.subr.mxu0 0.0
    %540 = vmatpush1.msra.mxu0 %v201
    %541 = vmatprep.subr.mxu0 0.0
    %542 = vmatpush1.msra.mxu0 %v202
    %543 = vmatprep.subr.mxu0 0.0
    %544 = vmatpush1.msra.mxu0 %v203
    %545 = vmatprep.subr.mxu0 0.0
    %546 = vmatpush1.msra.mxu0 0.0
    %547 = vmatprep.subr.mxu0 0.0
    %548 = vmatpush1.msra.mxu0 0.0
    %549 = vmatprep.subr.mxu0 0.0
    %550 = vmatpush1.msra.mxu0 0.0
    %551 = vmatprep.subr.mxu0 0.0
    %552 = vmatpush1.msra.mxu0 0.0
    %553 = vmatprep.subr.mxu0 0.0
    %554 = vmatpush1.msra.mxu0 0.0
    %555 = vmatprep.subr.mxu0 0.0
    %556 = vmatpush1.msra.mxu0 0.0
    %557 = vmatprep.subr.mxu0 0.0
    %558 = vmatpush1.msra.mxu0 0.0
    %559 = vmatprep.subr.mxu0 0.0
    %560 = vmatpush1.msra.mxu0 0.0
    %561 = vmatprep.subr.mxu0 0.0
    %562 = vmatpush1.msra.mxu0 0.0
    %563 = vmatprep.subr.mxu0 0.0
    %564 = vmatpush1.msra.mxu0 0.0
    %565 = vmatprep.subr.mxu0 0.0
    %566 = vmatpush1.msra.mxu0 0.0
    %567 = vmatprep.subr.mxu0 0.0
    %568 = vmatpush1.msra.mxu0 0.0
    %569 = vmatprep.subr.mxu0 0.0
    %570 = vmatpush1.msra.mxu0 0.0
    %571 = vmatprep.subr.mxu0 0.0
    %572 = vmatpush1.msra.mxu0 0.0
    %573 = vmatprep.subr.mxu0 0.0
    %574 = vmatpush1.msra.mxu0 0.0
    %575 = vmatprep.subr.mxu0 0.0
    %576 = vmatpush1.msra.mxu0 0.0
    %577 = vmatprep.mubr.f32.mxu0 0.0
    %578 = vmatmul.mubr.f32.gmra.mrb[0].mxu0 %v442
    %v579 = vpop.f32.mrb[0].mxu0
    %v580 = vadd.f32 0.0, %v579
    %v581 = vpop.f32.mrb[0].mxu0
    %582 = vdwg.mxu0
    %v583 = vlaneseq
    %v584 = vshrl.u32 %v583, 7
    %v585 = vsub.s32 0, %v584
    %v586 = vrot.slane %v510, %v585
    %v587 = vmul.f32 %v277, %v586
    %v588 = vlaneseq
    %v589 = vshrl.u32 %v588, 7
    %v590 = vsub.s32 0, %v589
    %v591 = vrot.slane %v580, %v590
    %v592 = vadd.f32 %v587, %v591
    %vm593 = vcmp.gt.f32.partialorder %v592, 0.0
    %v594 = vmul.f32 %v592, 0.01
    %v595 = vsel %vm593, %v592, %v594
    %v596 = vld [vmem:[#allocation7] sm:$0xff]
    %v597 = vld [vmem:[#allocation7 + $0x8] sm:$0xff]
    %v598 = vld [vmem:[#allocation7 + $0x10] sm:$0xff]
    %v599 = vld [vmem:[#allocation7 + $0x18] sm:$0xff]
    %v600 = vld [vmem:[#allocation7 + $0x20] sm:$0xff]
    %v601 = vld [vmem:[#allocation7 + $0x28] sm:$0xff]
    %v602 = vld [vmem:[#allocation7 + $0x30] sm:$0xff]
    %v603 = vld [vmem:[#allocation7 + $0x38] sm:$0xff]
    %v604 = vld [vmem:[#allocation7 + $0x40] sm:$0xff]
    %v605 = vld [vmem:[#allocation7 + $0x48] sm:$0xff]
    %v606 = vld [vmem:[#allocation7 + $0x50] sm:$0xff]
    %v607 = vld [vmem:[#allocation7 + $0x58] sm:$0xff]
    %v608 = vld [vmem:[#allocation7 + $0x60] sm:$0xff]
    %v609 = vld [vmem:[#allocation7 + $0x68] sm:$0xff]
    %v610 = vld [vmem:[#allocation7 + $0x70] sm:$0xff]
    %v611 = vld [vmem:[#allocation7 + $0x78] sm:$0xff]
    %v612 = vld [vmem:[%s8] sm:$0x1]
    %v613 = vld [vmem:[%s9] sm:$0x1]
    %v614 = vld [vmem:[%s10] sm:$0x1]
    %v615 = vld [vmem:[#allocation9] sm:$0xff]
    %v616 = vld [vmem:[#allocation9 + $0x8] sm:$0xff]
    %v617 = vld [vmem:[#allocation9 + $0x10] sm:$0xff]
    %v618 = vld [vmem:[#allocation9 + $0x18] sm:$0xff]
    %v619 = vld [vmem:[#allocation9 + $0x20] sm:$0xff]
    %v620 = vld [vmem:[#allocation9 + $0x28] sm:$0xff]
    %v621 = vld [vmem:[#allocation9 + $0x30] sm:$0xff]
    %v622 = vld [vmem:[#allocation9 + $0x38] sm:$0xff]
    %v623 = vld [vmem:[#allocation9 + $0x40] sm:$0xff]
    %v624 = vld [vmem:[#allocation9 + $0x48] sm:$0xff]
    %v625 = vld [vmem:[#allocation9 + $0x50] sm:$0xff]
    %v626 = vld [vmem:[#allocation9 + $0x58] sm:$0xff]
    %v627 = vld [vmem:[#allocation9 + $0x60] sm:$0xff]
    %v628 = vld [vmem:[#allocation9 + $0x68] sm:$0xff]
    %v629 = vld [vmem:[#allocation9 + $0x70] sm:$0xff]
    %v630 = vld [vmem:[#allocation9 + $0x78] sm:$0xff]
    %v631 = vld [vmem:[#allocation10] sm:$0xff]
    %v632 = vld [vmem:[#allocation10 + $0x8] sm:$0xff]
    %v633 = vld [vmem:[#allocation10 + $0x10] sm:$0xff]
    %v634 = vld [vmem:[#allocation10 + $0x18] sm:$0xff]
    %v635 = vld [vmem:[#allocation10 + $0x20] sm:$0xff]
    %v636 = vld [vmem:[#allocation10 + $0x28] sm:$0xff]
    %v637 = vld [vmem:[#allocation10 + $0x30] sm:$0xff]
    %v638 = vld [vmem:[#allocation10 + $0x38] sm:$0xff]
    %v639 = vld [vmem:[#allocation10 + $0x40] sm:$0xff]
    %v640 = vld [vmem:[#allocation10 + $0x48] sm:$0xff]
    %v641 = vld [vmem:[#allocation10 + $0x50] sm:$0xff]
    %v642 = vld [vmem:[#allocation10 + $0x58] sm:$0xff]
    %v643 = vld [vmem:[#allocation10 + $0x60] sm:$0xff]
    %v644 = vld [vmem:[#allocation10 + $0x68] sm:$0xff]
    %v645 = vld [vmem:[#allocation10 + $0x70] sm:$0xff]
    %v646 = vld [vmem:[#allocation10 + $0x78] sm:$0xff]
    %v648 = vlaneseq
    %v649 = vshrl.u32 %v648, 7
    %v650 = vsub.s32 0, %v649
    %v651 = vrot.slane %v612, %v650
    %653 = vmatprep.subr.mxu0 0.0
    %654 = vmatpush1.msra.mxu0 %v596
    %655 = vmatprep.subr.mxu0 0.0
    %656 = vmatpush1.msra.mxu0 %v597
    %657 = vmatprep.subr.mxu0 0.0
    %658 = vmatpush1.msra.mxu0 %v598
    %659 = vmatprep.subr.mxu0 0.0
    %660 = vmatpush1.msra.mxu0 %v599
    %661 = vmatprep.subr.mxu0 0.0
    %662 = vmatpush1.msra.mxu0 %v600
    %663 = vmatprep.subr.mxu0 0.0
    %664 = vmatpush1.msra.mxu0 %v601
    %665 = vmatprep.subr.mxu0 0.0
    %666 = vmatpush1.msra.mxu0 %v602
    %667 = vmatprep.subr.mxu0 0.0
    %668 = vmatpush1.msra.mxu0 %v603
    %669 = vmatprep.subr.mxu0 0.0
    %670 = vmatpush1.msra.mxu0 %v604
    %671 = vmatprep.subr.mxu0 0.0
    %672 = vmatpush1.msra.mxu0 %v605
    %673 = vmatprep.subr.mxu0 0.0
    %674 = vmatpush1.msra.mxu0 %v606
    %675 = vmatprep.subr.mxu0 0.0
    %676 = vmatpush1.msra.mxu0 %v607
    %677 = vmatprep.subr.mxu0 0.0
    %678 = vmatpush1.msra.mxu0 %v608
    %679 = vmatprep.subr.mxu0 0.0
    %680 = vmatpush1.msra.mxu0 %v609
    %681 = vmatprep.subr.mxu0 0.0
    %682 = vmatpush1.msra.mxu0 %v610
    %683 = vmatprep.subr.mxu0 0.0
    %684 = vmatpush1.msra.mxu0 %v611
    %685 = vmatprep.subr.mxu0 0.0
    %686 = vmatpush1.msra.mxu0 0.0
    %687 = vmatprep.subr.mxu0 0.0
    %688 = vmatpush1.msra.mxu0 0.0
    %689 = vmatprep.subr.mxu0 0.0
    %690 = vmatpush1.msra.mxu0 0.0
    %691 = vmatprep.subr.mxu0 0.0
    %692 = vmatpush1.msra.mxu0 0.0
    %693 = vmatprep.subr.mxu0 0.0
    %694 = vmatpush1.msra.mxu0 0.0
    %695 = vmatprep.subr.mxu0 0.0
    %696 = vmatpush1.msra.mxu0 0.0
    %697 = vmatprep.subr.mxu0 0.0
    %698 = vmatpush1.msra.mxu0 0.0
    %699 = vmatprep.subr.mxu0 0.0
    %700 = vmatpush1.msra.mxu0 0.0
    %701 = vmatprep.subr.mxu0 0.0
    %702 = vmatpush1.msra.mxu0 0.0
    %703 = vmatprep.subr.mxu0 0.0
    %704 = vmatpush1.msra.mxu0 0.0
    %705 = vmatprep.subr.mxu0 0.0
    %706 = vmatpush1.msra.mxu0 0.0
    %707 = vmatprep.subr.mxu0 0.0
    %708 = vmatpush1.msra.mxu0 0.0
    %709 = vmatprep.subr.mxu0 0.0
    %710 = vmatpush1.msra.mxu0 0.0
    %711 = vmatprep.subr.mxu0 0.0
    %712 = vmatpush1.msra.mxu0 0.0
    %713 = vmatprep.subr.mxu0 0.0
    %714 = vmatpush1.msra.mxu0 0.0
    %715 = vmatprep.subr.mxu0 0.0
    %716 = vmatpush1.msra.mxu0 0.0
    %717 = vmatprep.mubr.f32.mxu0 0.0
    %718 = vmatmul.mubr.f32.gmra.mrb[0].mxu0 %v595
    %v719 = vpop.f32.mrb[0].mxu0
    %v720 = vadd.f32 %v651, %v719
    %v721 = vpop.f32.mrb[0].mxu0
    %722 = vdwg.mxu0
    %v723 = vmul.f32 %v720, %v151
    %724 = vmatprep.subr.mxu0 0.0
    %725 = vmatpush1.msra.mxu0 %v615
    %726 = vmatprep.subr.mxu0 0.0
    %727 = vmatpush1.msra.mxu0 %v616
    %728 = vmatprep.subr.mxu0 0.0
    %729 = vmatpush1.msra.mxu0 %v617
    %730 = vmatprep.subr.mxu0 0.0
    %731 = vmatpush1.msra.mxu0 %v618
    %732 = vmatprep.subr.mxu0 0.0
    %733 = vmatpush1.msra.mxu0 %v619
    %734 = vmatprep.subr.mxu0 0.0
    %735 = vmatpush1.msra.mxu0 %v620
    %736 = vmatprep.subr.mxu0 0.0
    %737 = vmatpush1.msra.mxu0 %v621
    %738 = vmatprep.subr.mxu0 0.0
    %739 = vmatpush1.msra.mxu0 %v622
    %740 = vmatprep.subr.mxu0 0.0
    %741 = vmatpush1.msra.mxu0 %v623
    %742 = vmatprep.subr.mxu0 0.0
    %743 = vmatpush1.msra.mxu0 %v624
    %744 = vmatprep.subr.mxu0 0.0
    %745 = vmatpush1.msra.mxu0 %v625
    %746 = vmatprep.subr.mxu0 0.0
    %747 = vmatpush1.msra.mxu0 %v626
    %748 = vmatprep.subr.mxu0 0.0
    %749 = vmatpush1.msra.mxu0 %v627
    %750 = vmatprep.subr.mxu0 0.0
    %751 = vmatpush1.msra.mxu0 %v628
    %752 = vmatprep.subr.mxu0 0.0
    %753 = vmatpush1.msra.mxu0 %v629
    %754 = vmatprep.subr.mxu0 0.0
    %755 = vmatpush1.msra.mxu0 %v630
    %756 = vmatprep.subr.mxu0 0.0
    %757 = vmatpush1.msra.mxu0 0.0
    %758 = vmatprep.subr.mxu0 0.0
    %759 = vmatpush1.msra.mxu0 0.0
    %760 = vmatprep.subr.mxu0 0.0
    %761 = vmatpush1.msra.mxu0 0.0
    %762 = vmatprep.subr.mxu0 0.0
    %763 = vmatpush1.msra.mxu0 0.0
    %764 = vmatprep.subr.mxu0 0.0
    %765 = vmatpush1.msra.mxu0 0.0
    %766 = vmatprep.subr.mxu0 0.0
    %767 = vmatpush1.msra.mxu0 0.0
    %768 = vmatprep.subr.mxu0 0.0
    %769 = vmatpush1.msra.mxu0 0.0
    %770 = vmatprep.subr.mxu0 0.0
    %771 = vmatpush1.msra.mxu0 0.0
    %772 = vmatprep.subr.mxu0 0.0
    %773 = vmatpush1.msra.mxu0 0.0
    %774 = vmatprep.subr.mxu0 0.0
    %775 = vmatpush1.msra.mxu0 0.0
    %776 = vmatprep.subr.mxu0 0.0
    %777 = vmatpush1.msra.mxu0 0.0
    %778 = vmatprep.subr.mxu0 0.0
    %779 = vmatpush1.msra.mxu0 0.0
    %780 = vmatprep.subr.mxu0 0.0
    %781 = vmatpush1.msra.mxu0 0.0
    %782 = vmatprep.subr.mxu0 0.0
    %783 = vmatpush1.msra.mxu0 0.0
    %784 = vmatprep.subr.mxu0 0.0
    %785 = vmatpush1.msra.mxu0 0.0
    %786 = vmatprep.subr.mxu0 0.0
    %787 = vmatpush1.msra.mxu0 0.0
    %788 = vmatprep.mubr.f32.mxu0 0.0
    %789 = vmatmul.mubr.f32.gmra.mrb[0].mxu0 %v723
    %v790 = vpop.f32.mrb[0].mxu0
    %v791 = vadd.f32 0.0, %v790
    %v792 = vpop.f32.mrb[0].mxu0
    %793 = vdwg.mxu0
    %v794 = vrot.slane %v791, 4
    %v795 = vadd.f32 %v791, %v794
    %v796 = vrot.slane %v795, 2
    %v797 = vadd.f32 %v795, %v796
    %v798 = vrot.slane %v797, 1
    %v799 = vadd.f32 %v797, %v798
    %v800 = vmul.f32 %v723, %v720
    %801 = vmatprep.subr.mxu0 0.0
    %802 = vmatpush1.msra.mxu0 %v615
    %803 = vmatprep.subr.mxu0 0.0
    %804 = vmatpush1.msra.mxu0 %v616
    %805 = vmatprep.subr.mxu0 0.0
    %806 = vmatpush1.msra.mxu0 %v617
    %807 = vmatprep.subr.mxu0 0.0
    %808 = vmatpush1.msra.mxu0 %v618
    %809 = vmatprep.subr.mxu0 0.0
    %810 = vmatpush1.msra.mxu0 %v619
    %811 = vmatprep.subr.mxu0 0.0
    %812 = vmatpush1.msra.mxu0 %v620
    %813 = vmatprep.subr.mxu0 0.0
    %814 = vmatpush1.msra.mxu0 %v621
    %815 = vmatprep.subr.mxu0 0.0
    %816 = vmatpush1.msra.mxu0 %v622
    %817 = vmatprep.subr.mxu0 0.0
    %818 = vmatpush1.msra.mxu0 %v623
    %819 = vmatprep.subr.mxu0 0.0
    %820 = vmatpush1.msra.mxu0 %v624
    %821 = vmatprep.subr.mxu0 0.0
    %822 = vmatpush1.msra.mxu0 %v625
    %823 = vmatprep.subr.mxu0 0.0
    %824 = vmatpush1.msra.mxu0 %v626
    %825 = vmatprep.subr.mxu0 0.0
    %826 = vmatpush1.msra.mxu0 %v627
    %827 = vmatprep.subr.mxu0 0.0
    %828 = vmatpush1.msra.mxu0 %v628
    %829 = vmatprep.subr.mxu0 0.0
    %830 = vmatpush1.msra.mxu0 %v629
    %831 = vmatprep.subr.mxu0 0.0
    %832 = vmatpush1.msra.mxu0 %v630
    %833 = vmatprep.subr.mxu0 0.0
    %834 = vmatpush1.msra.mxu0 0.0
    %835 = vmatprep.subr.mxu0 0.0
    %836 = vmatpush1.msra.mxu0 0.0
    %837 = vmatprep.subr.mxu0 0.0
    %838 = vmatpush1.msra.mxu0 0.0
    %839 = vmatprep.subr.mxu0 0.0
    %840 = vmatpush1.msra.mxu0 0.0
    %841 = vmatprep.subr.mxu0 0.0
    %842 = vmatpush1.msra.mxu0 0.0
    %843 = vmatprep.subr.mxu0 0.0
    %844 = vmatpush1.msra.mxu0 0.0
    %845 = vmatprep.subr.mxu0 0.0
    %846 = vmatpush1.msra.mxu0 0.0
    %847 = vmatprep.subr.mxu0 0.0
    %848 = vmatpush1.msra.mxu0 0.0
    %849 = vmatprep.subr.mxu0 0.0
    %850 = vmatpush1.msra.mxu0 0.0
    %851 = vmatprep.subr.mxu0 0.0
    %852 = vmatpush1.msra.mxu0 0.0
    %853 = vmatprep.subr.mxu0 0.0
    %854 = vmatpush1.msra.mxu0 0.0
    %855 = vmatprep.subr.mxu0 0.0
    %856 = vmatpush1.msra.mxu0 0.0
    %857 = vmatprep.subr.mxu0 0.0
    %858 = vmatpush1.msra.mxu0 0.0
    %859 = vmatprep.subr.mxu0 0.0
    %860 = vmatpush1.msra.mxu0 0.0
    %861 = vmatprep.subr.mxu0 0.0
    %862 = vmatpush1.msra.mxu0 0.0
    %863 = vmatprep.subr.mxu0 0.0
    %864 = vmatpush1.msra.mxu0 0.0
    %865 = vmatprep.mubr.f32.mxu0 0.0
    %866 = vmatmul.mubr.f32.gmra.mrb[0].mxu0 %v800
    %v867 = vpop.f32.mrb[0].mxu0
    %v868 = vadd.f32 0.0, %v867
    %v869 = vpop.f32.mrb[0].mxu0
    %870 = vdwg.mxu0
    %v871 = vrot.slane %v868, 4
    %v872 = vadd.f32 %v868, %v871
    %v873 = vrot.slane %v872, 2
    %v874 = vadd.f32 %v872, %v873
    %v875 = vrot.slane %v874, 1
    %v876 = vadd.f32 %v874, %v875
    %v877 = vmul.f32 %v799, 0.25
    %v878 = vmul.f32 %v876, 0.25
    %v879 = vmul.f32 %v877, %v877
    %v880 = vsub.f32 %v878, %v879
    %v881 = vadd.f32 %v880, 1e-05
    %v882 = vrsqrt.pop %v881
    %v883 = vmul.f32 %v613, %v882
    %v884 = vmul.f32 %v877, %v883
    %v885 = vsub.f32 %v614, %v884
    %886 = vmatprep.subr.mxu0 0.0
    %887 = vmatpush1.msra.mxu0 %v631
    %888 = vmatprep.subr.mxu0 0.0
    %889 = vmatpush1.msra.mxu0 %v632
    %890 = vmatprep.subr.mxu0 0.0
    %891 = vmatpush1.msra.mxu0 %v633
    %892 = vmatprep.subr.mxu0 0.0
    %893 = vmatpush1.msra.mxu0 %v634
    %894 = vmatprep.subr.mxu0 0.0
    %895 = vmatpush1.msra.mxu0 %v635
    %896 = vmatprep.subr.mxu0 0.0
    %897 = vmatpush1.msra.mxu0 %v636
    %898 = vmatprep.subr.mxu0 0.0
    %899 = vmatpush1.msra.mxu0 %v637
    %900 = vmatprep.subr.mxu0 0.0
    %901 = vmatpush1.msra.mxu0 %v638
    %902 = vmatprep.subr.mxu0 0.0
    %903 = vmatpush1.msra.mxu0 %v639
    %904 = vmatprep.subr.mxu0 0.0
    %905 = vmatpush1.msra.mxu0 %v640
    %906 = vmatprep.subr.mxu0 0.0
    %907 = vmatpush1.msra.mxu0 %v641
    %908 = vmatprep.subr.mxu0 0.0
    %909 = vmatpush1.msra.mxu0 %v642
    %910 = vmatprep.subr.mxu0 0.0
    %911 = vmatpush1.msra.mxu0 %v643
    %912 = vmatprep.subr.mxu0 0.0
    %913 = vmatpush1.msra.mxu0 %v644
    %914 = vmatprep.subr.mxu0 0.0
    %915 = vmatpush1.msra.mxu0 %v645
    %916 = vmatprep.subr.mxu0 0.0
    %917 = vmatpush1.msra.mxu0 %v646
    %918 = vmatprep.subr.mxu0 0.0
    %919 = vmatpush1.msra.mxu0 0.0
    %920 = vmatprep.subr.mxu0 0.0
    %921 = vmatpush1.msra.mxu0 0.0
    %922 = vmatprep.subr.mxu0 0.0
    %923 = vmatpush1.msra.mxu0 0.0
    %924 = vmatprep.subr.mxu0 0.0
    %925 = vmatpush1.msra.mxu0 0.0
    %926 = vmatprep.subr.mxu0 0.0
    %927 = vmatpush1.msra.mxu0 0.0
    %928 = vmatprep.subr.mxu0 0.0
    %929 = vmatpush1.msra.mxu0 0.0
    %930 = vmatprep.subr.mxu0 0.0
    %931 = vmatpush1.msra.mxu0 0.0
    %932 = vmatprep.subr.mxu0 0.0
    %933 = vmatpush1.msra.mxu0 0.0
    %934 = vmatprep.subr.mxu0 0.0
    %935 = vmatpush1.msra.mxu0 0.0
    %936 = vmatprep.subr.mxu0 0.0
    %937 = vmatpush1.msra.mxu0 0.0
    %938 = vmatprep.subr.mxu0 0.0
    %939 = vmatpush1.msra.mxu0 0.0
    %940 = vmatprep.subr.mxu0 0.0
    %941 = vmatpush1.msra.mxu0 0.0
    %942 = vmatprep.subr.mxu0 0.0
    %943 = vmatpush1.msra.mxu0 0.0
    %944 = vmatprep.subr.mxu0 0.0
    %945 = vmatpush1.msra.mxu0 0.0
    %946 = vmatprep.subr.mxu0 0.0
    %947 = vmatpush1.msra.mxu0 0.0
    %948 = vmatprep.subr.mxu0 0.0
    %949 = vmatpush1.msra.mxu0 0.0
    %950 = vmatprep.mubr.f32.mxu0 0.0
    %951 = vmatmul.mubr.f32.gmra.mrb[0].mxu0 %v883
    %v952 = vpop.f32.mrb[0].mxu0
    %v953 = vadd.f32 0.0, %v952
    %v954 = vpop.f32.mrb[0].mxu0
    %955 = vdwg.mxu0
    %956 = vmatprep.subr.mxu0 0.0
    %957 = vmatpush1.msra.mxu0 %v631
    %958 = vmatprep.subr.mxu0 0.0
    %959 = vmatpush1.msra.mxu0 %v632
    %960 = vmatprep.subr.mxu0 0.0
    %961 = vmatpush1.msra.mxu0 %v633
    %962 = vmatprep.subr.mxu0 0.0
    %963 = vmatpush1.msra.mxu0 %v634
    %964 = vmatprep.subr.mxu0 0.0
    %965 = vmatpush1.msra.mxu0 %v635
    %966 = vmatprep.subr.mxu0 0.0
    %967 = vmatpush1.msra.mxu0 %v636
    %968 = vmatprep.subr.mxu0 0.0
    %969 = vmatpush1.msra.mxu0 %v637
    %970 = vmatprep.subr.mxu0 0.0
    %971 = vmatpush1.msra.mxu0 %v638
    %972 = vmatprep.subr.mxu0 0.0
    %973 = vmatpush1.msra.mxu0 %v639
    %974 = vmatprep.subr.mxu0 0.0
    %975 = vmatpush1.msra.mxu0 %v640
    %976 = vmatprep.subr.mxu0 0.0
    %977 = vmatpush1.msra.mxu0 %v641
    %978 = vmatprep.subr.mxu0 0.0
    %979 = vmatpush1.msra.mxu0 %v642
    %980 = vmatprep.subr.mxu0 0.0
    %981 = vmatpush1.msra.mxu0 %v643
    %982 = vmatprep.subr.mxu0 0.0
    %983 = vmatpush1.msra.mxu0 %v644
    %984 = vmatprep.subr.mxu0 0.0
    %985 = vmatpush1.msra.mxu0 %v645
    %986 = vmatprep.subr.mxu0 0.0
    %987 = vmatpush1.msra.mxu0 %v646
    %988 = vmatprep.subr.mxu0 0.0
    %989 = vmatpush1.msra.mxu0 0.0
    %990 = vmatprep.subr.mxu0 0.0
    %991 = vmatpush1.msra.mxu0 0.0
    %992 = vmatprep.subr.mxu0 0.0
    %993 = vmatpush1.msra.mxu0 0.0
    %994 = vmatprep.subr.mxu0 0.0
    %995 = vmatpush1.msra.mxu0 0.0
    %996 = vmatprep.subr.mxu0 0.0
    %997 = vmatpush1.msra.mxu0 0.0
    %998 = vmatprep.subr.mxu0 0.0
    %999 = vmatpush1.msra.mxu0 0.0
    %1000 = vmatprep.subr.mxu0 0.0
    %1001 = vmatpush1.msra.mxu0 0.0
    %1002 = vmatprep.subr.mxu0 0.0
    %1003 = vmatpush1.msra.mxu0 0.0
    %1004 = vmatprep.subr.mxu0 0.0
    %1005 = vmatpush1.msra.mxu0 0.0
    %1006 = vmatprep.subr.mxu0 0.0
    %1007 = vmatpush1.msra.mxu0 0.0
    %1008 = vmatprep.subr.mxu0 0.0
    %1009 = vmatpush1.msra.mxu0 0.0
    %1010 = vmatprep.subr.mxu0 0.0
    %1011 = vmatpush1.msra.mxu0 0.0
    %1012 = vmatprep.subr.mxu0 0.0
    %1013 = vmatpush1.msra.mxu0 0.0
    %1014 = vmatprep.subr.mxu0 0.0
    %1015 = vmatpush1.msra.mxu0 0.0
    %1016 = vmatprep.subr.mxu0 0.0
    %1017 = vmatpush1.msra.mxu0 0.0
    %1018 = vmatprep.subr.mxu0 0.0
    %1019 = vmatpush1.msra.mxu0 0.0
    %1020 = vmatprep.mubr.f32.mxu0 0.0
    %1021 = vmatmul.mubr.f32.gmra.mrb[0].mxu0 %v885
    %v1022 = vpop.f32.mrb[0].mxu0
    %v1023 = vadd.f32 0.0, %v1022
    %v1024 = vpop.f32.mrb[0].mxu0
    %1025 = vdwg.mxu0
    %v1026 = vlaneseq
    %v1027 = vshrl.u32 %v1026, 7
    %v1028 = vsub.s32 0, %v1027
    %v1029 = vrot.slane %v953, %v1028
    %v1030 = vmul.f32 %v720, %v1029
    %v1031 = vlaneseq
    %v1032 = vshrl.u32 %v1031, 7
    %v1033 = vsub.s32 0, %v1032
    %v1034 = vrot.slane %v1023, %v1033
    %v1035 = vadd.f32 %v1030, %v1034
    %vm1036 = vcmp.gt.f32.partialorder %v1035, 0.0
    %v1037 = vmul.f32 %v1035, 0.01
    %v1038 = vsel %vm1036, %v1035, %v1037
    %v1039 = vld [vmem:[#allocation12] sm:$0xff]
    %v1040 = vld [vmem:[#allocation12 + $0x8] sm:$0xff]
    %v1041 = vld [vmem:[#allocation12 + $0x10] sm:$0xff]
    %v1042 = vld [vmem:[#allocation12 + $0x18] sm:$0xff]
    %v1043 = vld [vmem:[#allocation12 + $0x20] sm:$0xff]
    %v1044 = vld [vmem:[#allocation12 + $0x28] sm:$0xff]
    %v1045 = vld [vmem:[#allocation12 + $0x30] sm:$0xff]
    %v1046 = vld [vmem:[#allocation12 + $0x38] sm:$0xff]
    %v1047 = vld [vmem:[#allocation12 + $0x40] sm:$0xff]
    %v1048 = vld [vmem:[#allocation12 + $0x48] sm:$0xff]
    %v1049 = vld [vmem:[#allocation12 + $0x50] sm:$0xff]
    %v1050 = vld [vmem:[#allocation12 + $0x58] sm:$0xff]
    %v1051 = vld [vmem:[#allocation12 + $0x60] sm:$0xff]
    %v1052 = vld [vmem:[#allocation12 + $0x68] sm:$0xff]
    %v1053 = vld [vmem:[#allocation12 + $0x70] sm:$0xff]
    %v1054 = vld [vmem:[#allocation12 + $0x78] sm:$0xff]
    %v1055 = vld [vmem:[%s14] sm:$0x1]
    %1056 = vst [vmem:[%s16] sm:$0xff] %v1038
    %v1058 = vlaneseq
    %v1059 = vshrl.u32 %v1058, 7
    %v1060 = vsub.s32 0, %v1059
    %v1061 = vrot.slane %v1055, %v1060
    %1063 = vmatprep.subr.mxu0 0.0
    %1064 = vmatpush1.msra.mxu0 %v1039
    %1065 = vmatprep.subr.mxu0 0.0
    %1066 = vmatpush1.msra.mxu0 %v1040
    %1067 = vmatprep.subr.mxu0 0.0
    %1068 = vmatpush1.msra.mxu0 %v1041
    %1069 = vmatprep.subr.mxu0 0.0
    %1070 = vmatpush1.msra.mxu0 %v1042
    %1071 = vmatprep.subr.mxu0 0.0
    %1072 = vmatpush1.msra.mxu0 %v1043
    %1073 = vmatprep.subr.mxu0 0.0
    %1074 = vmatpush1.msra.mxu0 %v1044
    %1075 = vmatprep.subr.mxu0 0.0
    %1076 = vmatpush1.msra.mxu0 %v1045
    %1077 = vmatprep.subr.mxu0 0.0
    %1078 = vmatpush1.msra.mxu0 %v1046
    %1079 = vmatprep.subr.mxu0 0.0
    %1080 = vmatpush1.msra.mxu0 %v1047
    %1081 = vmatprep.subr.mxu0 0.0
    %1082 = vmatpush1.msra.mxu0 %v1048
    %1083 = vmatprep.subr.mxu0 0.0
    %1084 = vmatpush1.msra.mxu0 %v1049
    %1085 = vmatprep.subr.mxu0 0.0
    %1086 = vmatpush1.msra.mxu0 %v1050
    %1087 = vmatprep.subr.mxu0 0.0
    %1088 = vmatpush1.msra.mxu0 %v1051
    %1089 = vmatprep.subr.mxu0 0.0
    %1090 = vmatpush1.msra.mxu0 %v1052
    %1091 = vmatprep.subr.mxu0 0.0
    %1092 = vmatpush1.msra.mxu0 %v1053
    %1093 = vmatprep.subr.mxu0 0.0
    %1094 = vmatpush1.msra.mxu0 %v1054
    %1095 = vmatprep.subr.mxu0 0.0
    %1096 = vmatpush1.msra.mxu0 0.0
    %1097 = vmatprep.subr.mxu0 0.0
    %1098 = vmatpush1.msra.mxu0 0.0
    %1099 = vmatprep.subr.mxu0 0.0
    %1100 = vmatpush1.msra.mxu0 0.0
    %1101 = vmatprep.subr.mxu0 0.0
    %1102 = vmatpush1.msra.mxu0 0.0
    %1103 = vmatprep.subr.mxu0 0.0
    %1104 = vmatpush1.msra.mxu0 0.0
    %1105 = vmatprep.subr.mxu0 0.0
    %1106 = vmatpush1.msra.mxu0 0.0
    %1107 = vmatprep.subr.mxu0 0.0
    %1108 = vmatpush1.msra.mxu0 0.0
    %1109 = vmatprep.subr.mxu0 0.0
    %1110 = vmatpush1.msra.mxu0 0.0
    %1111 = vmatprep.subr.mxu0 0.0
    %1112 = vmatpush1.msra.mxu0 0.0
    %1113 = vmatprep.subr.mxu0 0.0
    %1114 = vmatpush1.msra.mxu0 0.0
    %1115 = vmatprep.subr.mxu0 0.0
    %1116 = vmatpush1.msra.mxu0 0.0
    %1117 = vmatprep.subr.mxu0 0.0
    %1118 = vmatpush1.msra.mxu0 0.0
    %1119 = vmatprep.subr.mxu0 0.0
    %1120 = vmatpush1.msra.mxu0 0.0
    %1121 = vmatprep.subr.mxu0 0.0
    %1122 = vmatpush1.msra.mxu0 0.0
    %1123 = vmatprep.subr.mxu0 0.0
    %1124 = vmatpush1.msra.mxu0 0.0
    %1125 = vmatprep.subr.mxu0 0.0
    %1126 = vmatpush1.msra.mxu0 0.0
    %1127 = vmatprep.mubr.f32.mxu0 0.0
    %1128 = vmatmul.mubr.f32.gmra.mrb[0].mxu0 %v1038
    %v1129 = vpop.f32.mrb[0].mxu0
    %v1130 = vadd.f32 %v1061, %v1129
    %v1131 = vpop.f32.mrb[0].mxu0
    %1132 = vdwg.mxu0
    %v1133 = vsub.f32 0.0, %v1130
    %v1134 = vmul.f32 %v1133, 1.442695
    %v1135 = vpow.pop %v1134
    %v1136 = vadd.f32 %v1135, 1.0
    %v1137 = vrcp.pop %v1136
    %1138 = vst [vmem:[%s15] sm:$0xff] %v1137
    // Predicated region
    $region90: #{discriminator.1} parent=1 // pred_check
      _
    $region91: #{discriminator.1} parent=1 // pred_check_branch
      %1140 = sbr.rel (0) target = $region93
    $region92: #{discriminator.1} parent=1 // pred_region
      _
    $region93: #{discriminator.1} parent=1 // pred_fallthru
      _
    // Predicated region
    $region94: #{discriminator.1} parent=1 // pred_check
      _
    $region95: #{discriminator.1} parent=1 // pred_check_branch
      %1142 = sbr.rel (0) target = $region97
    $region96: #{discriminator.1} parent=1 // pred_region
      _
    $region97: #{discriminator.1} parent=1 // pred_fallthru
      _
    // Predicated region
    $region98: #{discriminator.1} parent=1 // pred_check
      _
    $region99: #{discriminator.1} parent=1 // pred_check_branch
      %1144 = sbr.rel (0) target = $region101
    $region100: #{discriminator.1} parent=1 // pred_region
      _
    $region101: #{discriminator.1} parent=1 // pred_fallthru
      _
    // Predicated region
    $region102: #{discriminator.1} parent=1 // pred_check
      _
    $region103: #{discriminator.1} parent=1 // pred_check_branch
      %1146 = sbr.rel (0) target = $region105
    $region104: #{discriminator.1} parent=1 // pred_region
      _
    $region105: #{discriminator.1} parent=1 // pred_fallthru
      _
    %1147 = vsyncpa [#allocation3], 1
    %1148 = vsyncpa [#allocation5], 1
    %1149 = vsyncpa [#allocation8], 1
    %1150 = vsyncpa [#allocation11], 1

</llo_original>
